<compile_context>
chip_gen: v7x
topology: tpu7x:2x2x1
jax: 0.10.0
libtpu: 0.0.40
codegen_flags: <defaults>
</compile_context>

<pallas_src>
import numpy as np
import jax
import jax.numpy as jnp
from jax.experimental import pallas as pl
from jax.experimental.pallas import tpu as pltpu

EPS = 1e-5  # PyTorch BatchNorm default


# ----------------------------------------------------------------------------
# Kernels
# ----------------------------------------------------------------------------
def _point_mlp_max_kernel(relu_out):
    """Point MLP (conv1/2/3 with BN folded) + running max over N tiles.

    refs: x (1, TILE_N, 3) f32 | w1 (1, 3, 64) f32 | b1 (1, 64) f32
          w2 (64, 128) bf16    | b2 (1, 128) f32
          w3 (128, 1024) bf16  | b3 (1, 1024) f32
          out (1, 1, 1024) f32 | acc scratch (1, 1024) f32
    """

    def kernel(x_ref, w1_ref, b1_ref, w2_ref, b2_ref, w3_ref, b3_ref,
               out_ref, acc_ref):
        n = pl.program_id(1)

        x = x_ref[0]                                   # (TILE_N, 3) f32
        w1 = w1_ref[0]                                 # (3, 64)     f32
        # conv1 as 3 broadcast FMAs on the VPU (a K=3 matmul wastes the MXU)
        h = (x[:, 0:1] * w1[0:1, :]
             + x[:, 1:2] * w1[1:2, :]
             + x[:, 2:3] * w1[2:3, :]) + b1_ref[...]
        h = jnp.maximum(h, 0.0).astype(jnp.bfloat16)   # (TILE_N, 64)

        h = jnp.dot(h, w2_ref[...],
                    preferred_element_type=jnp.float32) + b2_ref[...]
        h = jnp.maximum(h, 0.0).astype(jnp.bfloat16)   # (TILE_N, 128)

        # conv3: bias (and ReLU for the STN path) are applied after the max.
        h = jnp.dot(h, w3_ref[...],
                    preferred_element_type=jnp.float32)  # (TILE_N, 1024) f32

        tile_max = jnp.max(h, axis=0, keepdims=True)     # (1, 1024)

        @pl.when(n == 0)
        def _():
            acc_ref[...] = tile_max

        @pl.when(n > 0)
        def _():
            acc_ref[...] = jnp.maximum(acc_ref[...], tile_max)

        @pl.when(n == pl.num_programs(1) - 1)
        def _():
            res = acc_ref[...] + b3_ref[...]
            if relu_out:                                  # static Python flag
                res = jnp.maximum(res, 0.0)
            out_ref[0] = res

    return kernel


def _stn_fc_kernel(g_ref, w1, b1, w2, b2, w3, b3, out_ref):
    # g: (B, 1024) f32 ; out: (B, 9) f32 ; b3 already contains the identity.
    g = g_ref[...]
    h = jnp.maximum(jnp.dot(g, w1[...],
                            preferred_element_type=jnp.float32) + b1[...], 0.0)
    h = jnp.maximum(jnp.dot(h, w2[...],
                            preferred_element_type=jnp.float32) + b2[...], 0.0)
    out_ref[...] = jnp.dot(h, w3[...],
                           preferred_element_type=jnp.float32) + b3[...]


# ----------------------------------------------------------------------------
# pallas_call wrappers
# ----------------------------------------------------------------------------
def _choose_tile_n(n, target=512):
    """Largest N tile <= target that divides N and is a multiple of 8."""
    if n <= target:
        return n
    for t in range(target, 7, -1):
        if n % t == 0 and t % 8 == 0:
            return t
    return n  # fall back to untiled


def point_mlp_max(x, w1, b1, w2, b2, w3, b3, *, relu_out, tile_n=None):
    """x: (B, N, 3) f32.  w1 either (3, 64) shared or (B, 3, 64) per-batch."""
    B, N, C = x.shape
    assert C == 3

    if tile_n is None or N % tile_n != 0 or (tile_n != N and tile_n % 8 != 0):
        tile_n = _choose_tile_n(N)
    n_steps = N // tile_n

    if w1.ndim == 2:
        w1b = w1[None]                                   # (1, 3, 64) shared
        w1_map = lambda b, n: (0, 0, 0)
    else:
        w1b = w1                                         # (B, 3, 64) per-batch
        w1_map = lambda b, n: (b, 0, 0)

    # bf16 MXU inputs for the two big matmuls (f32 accumulation in-kernel).
    w2b = w2.astype(jnp.bfloat16)
    w3b = w3.astype(jnp.bfloat16)

    def full(arr):
        nd = arr.ndim
        return pl.BlockSpec(arr.shape, lambda b, n, _nd=nd: (0,) * _nd)

    out = pl.pallas_call(
        _point_mlp_max_kernel(relu_out),
        out_shape=jax.ShapeDtypeStruct((B, 1, 1024), jnp.float32),
        grid=(B, n_steps),
        in_specs=[
            pl.BlockSpec((1, tile_n, C), lambda b, n: (b, n, 0)),
            pl.BlockSpec((1, 3, 64), w1_map),
            full(b1), full(w2b), full(b2), full(w3b), full(b3),
        ],
        out_specs=pl.BlockSpec((1, 1, 1024), lambda b, n: (b, 0, 0)),
        scratch_shapes=[pltpu.VMEM((1, 1024), jnp.float32)],
        compiler_params=pltpu.CompilerParams(
            dimension_semantics=("parallel", "arbitrary")),
    )(x, w1b, b1, w2b, b2, w3b, b3)
    return out.reshape(B, 1024)


def stn_fc_head(g, p):
    """g: (B, 1024) f32 -> (B, 9) f32 (identity already folded into fc3 bias)."""
    B = g.shape[0]
    w1, b1 = p["f1"]
    w2, b2 = p["f2"]
    w3, b3 = p["f3"]
    return pl.pallas_call(
        _stn_fc_kernel,
        out_shape=jax.ShapeDtypeStruct((B, 9), jnp.float32),
    )(g, w1, b1, w2, b2, w3, b3)


# ----------------------------------------------------------------------------
# Parameter initialization (deterministic, synthetic; BN folded into W & bias)
# ----------------------------------------------------------------------------
def _make_affine_layer(key, cin, cout):
    """Conv1d(k=1)/Linear + BatchNorm1d folded: returns (W_folded, bias)."""
    kw, kb, kg, kbeta, km, kv = jax.random.split(key, 6)
    w = jax.random.normal(kw, (cin, cout), jnp.float32) * 0.1
    conv_b = jax.random.normal(kb, (cout,), jnp.float32) * 0.1
    gamma = jax.random.uniform(kg, (cout,), jnp.float32, minval=0.5, maxval=1.5)
    beta = jax.random.normal(kbeta, (cout,), jnp.float32) * 0.1
    mean = jax.random.normal(km, (cout,), jnp.float32) * 0.1
    var = jax.random.uniform(kv, (cout,), jnp.float32, minval=0.5, maxval=1.5)
    scale = gamma / jnp.sqrt(var + EPS)
    w_folded = w * scale[None, :]
    bias = (conv_b - mean) * scale + beta
    return w_folded, bias.reshape(1, cout)


def _make_fc3_with_iden(key, cin):
    kw, kb = jax.random.split(key, 2)
    w = jax.random.normal(kw, (cin, 9), jnp.float32) * 0.1
    b = jax.random.normal(kb, (9,), jnp.float32) * 0.1
    b = b.reshape(1, 9) + jnp.eye(3, dtype=jnp.float32).reshape(1, 9)
    return w, b


def init_params(key, channel=3):
    ks = jax.random.split(key, 9)
    stn = {
        "c1": _make_affine_layer(ks[0], channel, 64),
        "c2": _make_affine_layer(ks[1], 64, 128),
        "c3": _make_affine_layer(ks[2], 128, 1024),
        "f1": _make_affine_layer(ks[3], 1024, 512),
        "f2": _make_affine_layer(ks[4], 512, 256),
        "f3": _make_fc3_with_iden(ks[5], 256),
    }
    enc = {
        "c1": _make_affine_layer(ks[6], channel, 64),
        "c2": _make_affine_layer(ks[7], 64, 128),
        "c3": _make_affine_layer(ks[8], 128, 1024),
    }
    return {"stn": stn, "enc": enc}


# ----------------------------------------------------------------------------
# Full forward (global_feat=True, feature_transform=False, channel=3)
# ----------------------------------------------------------------------------
def pointnet_encoder_forward(x_bcn, params, tile_n=None):
    """x_bcn: (B, C, N) float32, matching the PyTorch input layout."""
    B, C, N = x_bcn.shape
    # TODO(synk): D>3 feature-split path and feature_transform=True branch of
    # PointNetEncoder not implemented (default channel=3, feature_transform=False).
    x = jnp.transpose(x_bcn, (0, 2, 1))                       # (B, N, C)

    # --- STN3d: point MLP + global max (tiled over N), then FC head ---
    ps = params["stn"]
    g = point_mlp_max(x, ps["c1"][0], ps["c1"][1],
                      ps["c2"][0], ps["c2"][1],
                      ps["c3"][0], ps["c3"][1],
                      relu_out=True, tile_n=tile_n)           # (B, 1024)
    trans = stn_fc_head(g, ps).reshape(B, 3, 3)

    # --- encoder backbone: fold bmm(x, trans) into conv1 via W1_eff = trans @ W1
    pe = params["enc"]
    w1_eff = jnp.einsum("bij,jd->bid", trans, pe["c1"][0])    # (B, 3, 64) f32
    global_feat = point_mlp_max(x, w1_eff, pe["c1"][1],
                                pe["c2"][0], pe["c2"][1],
                                pe["c3"][0], pe["c3"][1],
                                relu_out=False, tile_n=tile_n)  # (B, 1024)
    return global_feat, trans, None                           # trans_feat is None


# ----------------------------------------------------------------------------
# Pure-JAX f32 reference for verification
# ----------------------------------------------------------------------------
def reference_forward(x_bcn, params):
    x = jnp.transpose(x_bcn, (0, 2, 1))
    p = params["stn"]
    h = x
    for name in ("c1", "c2", "c3"):
        w, b = p[name]
        h = jnp.maximum(jnp.einsum("bnc,cd->bnd", h, w) + b, 0.0)
    g = jnp.max(h, axis=1)
    w, b = p["f1"]; h = jnp.maximum(g @ w + b, 0.0)
    w, b = p["f2"]; h = jnp.maximum(h @ w + b, 0.0)
    w, b = p["f3"]
    trans = (h @ w + b).reshape(-1, 3, 3)                     # iden already in b
    xt = jnp.einsum("bnc,bcd->bnd", x, trans)
    pe = params["enc"]
    w, b = pe["c1"]; h = jnp.maximum(jnp.einsum("bnc,cd->bnd", xt, w) + b, 0.0)
    w, b = pe["c2"]; h = jnp.maximum(jnp.einsum("bnc,cd->bnd", h, w) + b, 0.0)
    w, b = pe["c3"]; h = jnp.einsum("bnc,cd->bnd", h, w) + b
    return jnp.max(h, axis=1), trans


if __name__ == "__main__":
    key = jax.random.PRNGKey(0)
    kx, kp = jax.random.split(key)
    B, C, N = 2, 3, 256
    x = jax.random.normal(kx, (B, C, N), jnp.float32)
    params = init_params(kp, channel=C)

    # tile_n=64 exercises the multi-step running-max path (grid = (2, 4)).
    gf, trans, trans_feat = pointnet_encoder_forward(x, params, tile_n=64)
    jax.block_until_ready((gf, trans))

    gf_ref, trans_ref = reference_forward(x, params)
    # bf16 MXU inputs (f32 accumulation) -> allow ~2e-2 deviation vs f32 ref.
    np.testing.assert_allclose(np.asarray(trans), np.asarray(trans_ref),
                               rtol=2e-2, atol=2e-2)
    np.testing.assert_allclose(np.asarray(gf), np.asarray(gf_ref),
                               rtol=2e-2, atol=2e-2)
    assert gf.shape == (B, 1024) and trans.shape == (B, 3, 3) and trans_feat is None
    print("KERNEL_OK")
</pallas_src>

<mosaic_0001>
module attributes {stable_mosaic.version = 11 : i64} {
  func.func @kernel(%arg0: i32, %arg1: i32, %arg2: memref<1x64x3xf32, #tpu.memory_space<vmem>>, %arg3: memref<1x3x64xf32, #tpu.memory_space<vmem>>, %arg4: memref<1x64xf32, #tpu.memory_space<vmem>>, %arg5: memref<64x128xbf16, #tpu.memory_space<vmem>>, %arg6: memref<1x128xf32, #tpu.memory_space<vmem>>, %arg7: memref<128x1024xbf16, #tpu.memory_space<vmem>>, %arg8: memref<1x1024xf32, #tpu.memory_space<vmem>>, %arg9: memref<1x1x1024xf32, #tpu.memory_space<vmem>>, %arg10: memref<1x1024xf32, #tpu.memory_space<vmem>>) attributes {dimension_semantics = [#tpu.dimension_semantics<parallel>, #tpu.dimension_semantics<arbitrary>], iteration_bounds = array<i64: 2, 4>, scalar_prefetch = 0 : i64, scratch_operands = 1 : i64, tpu.core_type = #tpu.core_type<tc>, window_params = [{transform_indices = @transform_0, window_bounds = array<i64: 1, 64, 3>}, {pipeline_mode = #tpu.pipeline_mode<synchronous>, transform_indices = @transform_1, window_bounds = array<i64: 1, 3, 64>}, {pipeline_mode = #tpu.pipeline_mode<synchronous>, transform_indices = @transform_2, window_bounds = array<i64: 1, 64>}, {pipeline_mode = #tpu.pipeline_mode<synchronous>, transform_indices = @transform_3, window_bounds = array<i64: 64, 128>}, {pipeline_mode = #tpu.pipeline_mode<synchronous>, transform_indices = @transform_4, window_bounds = array<i64: 1, 128>}, {pipeline_mode = #tpu.pipeline_mode<synchronous>, transform_indices = @transform_5, window_bounds = array<i64: 128, 1024>}, {pipeline_mode = #tpu.pipeline_mode<synchronous>, transform_indices = @transform_6, window_bounds = array<i64: 1, 1024>}, {transform_indices = @transform_7, window_bounds = array<i64: 1, 1, 1024>}]} {
    %c0 = arith.constant 0 : index
    %c0_0 = arith.constant 0 : index
    %c0_1 = arith.constant 0 : index
    %0 = vector.load %arg2[%c0, %c0_0, %c0_1] : memref<1x64x3xf32, #tpu.memory_space<vmem>>, vector<1x64x3xf32>
    %1 = vector.shape_cast %0 : vector<1x64x3xf32> to vector<64x3xf32>
    %c0_2 = arith.constant 0 : index
    %c0_3 = arith.constant 0 : index
    %c0_4 = arith.constant 0 : index
    %2 = vector.load %arg3[%c0_2, %c0_3, %c0_4] : memref<1x3x64xf32, #tpu.memory_space<vmem>>, vector<1x3x64xf32>
    %3 = vector.shape_cast %2 : vector<1x3x64xf32> to vector<3x64xf32>
    %4 = vector.extract_strided_slice %1 {offsets = [0, 0], sizes = [64, 1], strides = [1, 1]} : vector<64x3xf32> to vector<64x1xf32>
    %5 = vector.extract_strided_slice %3 {offsets = [0, 0], sizes = [1, 64], strides = [1, 1]} : vector<3x64xf32> to vector<1x64xf32>
    %6 = vector.broadcast %4 : vector<64x1xf32> to vector<64x64xf32>
    %7 = vector.broadcast %5 : vector<1x64xf32> to vector<64x64xf32>
    %8 = arith.mulf %6, %7 : vector<64x64xf32>
    %9 = vector.extract_strided_slice %1 {offsets = [0, 1], sizes = [64, 1], strides = [1, 1]} : vector<64x3xf32> to vector<64x1xf32>
    %10 = vector.extract_strided_slice %3 {offsets = [1, 0], sizes = [1, 64], strides = [1, 1]} : vector<3x64xf32> to vector<1x64xf32>
    %11 = vector.broadcast %9 : vector<64x1xf32> to vector<64x64xf32>
    %12 = vector.broadcast %10 : vector<1x64xf32> to vector<64x64xf32>
    %13 = arith.mulf %11, %12 : vector<64x64xf32>
    %14 = arith.addf %8, %13 : vector<64x64xf32>
    %15 = vector.extract_strided_slice %1 {offsets = [0, 2], sizes = [64, 1], strides = [1, 1]} : vector<64x3xf32> to vector<64x1xf32>
    %16 = vector.extract_strided_slice %3 {offsets = [2, 0], sizes = [1, 64], strides = [1, 1]} : vector<3x64xf32> to vector<1x64xf32>
    %17 = vector.broadcast %15 : vector<64x1xf32> to vector<64x64xf32>
    %18 = vector.broadcast %16 : vector<1x64xf32> to vector<64x64xf32>
    %19 = arith.mulf %17, %18 : vector<64x64xf32>
    %20 = arith.addf %14, %19 : vector<64x64xf32>
    %c0_5 = arith.constant 0 : index
    %c0_6 = arith.constant 0 : index
    %21 = vector.load %arg4[%c0_5, %c0_6] : memref<1x64xf32, #tpu.memory_space<vmem>>, vector<1x64xf32>
    %22 = vector.broadcast %21 : vector<1x64xf32> to vector<64x64xf32>
    %23 = arith.addf %20, %22 : vector<64x64xf32>
    %cst = arith.constant 0.000000e+00 : f32
    %24 = vector.broadcast %cst : f32 to vector<64x64xf32>
    %25 = arith.maximumf %23, %24 : vector<64x64xf32>
    %26 = arith.truncf %25 : vector<64x64xf32> to vector<64x64xbf16>
    %c0_7 = arith.constant 0 : index
    %c0_8 = arith.constant 0 : index
    %27 = vector.load %arg5[%c0_7, %c0_8] : memref<64x128xbf16, #tpu.memory_space<vmem>>, vector<64x128xbf16>
    %cst_9 = arith.constant dense<0.000000e+00> : vector<64x128xf32>
    %28 = tpu.matmul %26, %27, %cst_9 {dimension_numbers = #tpu.dot_dimension_numbers<[1], [0], [0], [1], [0, 0, 1, 1], [], []>} : vector<64x64xbf16>, vector<64x128xbf16>, vector<64x128xf32> -> vector<64x128xf32>
    %c0_10 = arith.constant 0 : index
    %c0_11 = arith.constant 0 : index
    %29 = vector.load %arg6[%c0_10, %c0_11] : memref<1x128xf32, #tpu.memory_space<vmem>>, vector<1x128xf32>
    %30 = vector.broadcast %29 : vector<1x128xf32> to vector<64x128xf32>
    %31 = arith.addf %28, %30 : vector<64x128xf32>
    %cst_12 = arith.constant 0.000000e+00 : f32
    %32 = vector.broadcast %cst_12 : f32 to vector<64x128xf32>
    %33 = arith.maximumf %31, %32 : vector<64x128xf32>
    %34 = arith.truncf %33 : vector<64x128xf32> to vector<64x128xbf16>
    %c0_13 = arith.constant 0 : index
    %c0_14 = arith.constant 0 : index
    %35 = vector.load %arg7[%c0_13, %c0_14] : memref<128x1024xbf16, #tpu.memory_space<vmem>>, vector<128x1024xbf16>
    %cst_15 = arith.constant dense<0.000000e+00> : vector<64x1024xf32>
    %36 = tpu.matmul %34, %35, %cst_15 {dimension_numbers = #tpu.dot_dimension_numbers<[1], [0], [0], [1], [0, 0, 1, 1], [], []>} : vector<64x128xbf16>, vector<128x1024xbf16>, vector<64x1024xf32> -> vector<64x1024xf32>
    %cst_16 = arith.constant dense<0xFF800000> : vector<1024xf32>
    %37 = vector.multi_reduction <maximumf>, %36, %cst_16 [0] : vector<64x1024xf32> to vector<1024xf32>
    %38 = vector.shape_cast %37 : vector<1024xf32> to vector<1x1024xf32>
    %c0_i32 = arith.constant 0 : i32
    %39 = arith.cmpi eq, %arg1, %c0_i32 : i32
    %40 = arith.extui %39 : i1 to i32
    %c0_i32_17 = arith.constant 0 : i32
    %41 = arith.cmpi ne, %40, %c0_i32_17 : i32
    scf.if %41 {
      %c0_21 = arith.constant 0 : index
      %c0_22 = arith.constant 0 : index
      %48 = vector.load %arg10[%c0_21, %c0_22] : memref<1x1024xf32, #tpu.memory_space<vmem>>, vector<1x1024xf32>
      tpu.vector_store %arg10[%c0_21, %c0_22], %38 {strides = array<i32>} : memref<1x1024xf32, #tpu.memory_space<vmem>>, vector<1x1024xf32>,
    } else {
    }
    %c0_i32_18 = arith.constant 0 : i32
    %42 = arith.cmpi sgt, %arg1, %c0_i32_18 : i32
    %43 = arith.extui %42 : i1 to i32
    %c0_i32_19 = arith.constant 0 : i32
    %44 = arith.cmpi ne, %43, %c0_i32_19 : i32
    scf.if %44 {
      %c0_21 = arith.constant 0 : index
      %c0_22 = arith.constant 0 : index
      %48 = vector.load %arg10[%c0_21, %c0_22] : memref<1x1024xf32, #tpu.memory_space<vmem>>, vector<1x1024xf32>
      %49 = arith.maximumf %48, %38 : vector<1x1024xf32>
      %c0_23 = arith.constant 0 : index
      %c0_24 = arith.constant 0 : index
      %50 = vector.load %arg10[%c0_23, %c0_24] : memref<1x1024xf32, #tpu.memory_space<vmem>>, vector<1x1024xf32>
      tpu.vector_store %arg10[%c0_23, %c0_24], %49 {strides = array<i32>} : memref<1x1024xf32, #tpu.memory_space<vmem>>, vector<1x1024xf32>,
    } else {
    }
    %c3_i32 = arith.constant 3 : i32
    %45 = arith.cmpi eq, %arg1, %c3_i32 : i32
    %46 = arith.extui %45 : i1 to i32
    %c0_i32_20 = arith.constant 0 : i32
    %47 = arith.cmpi ne, %46, %c0_i32_20 : i32
    scf.if %47 {
      %c0_21 = arith.constant 0 : index
      %c0_22 = arith.constant 0 : index
      %48 = vector.load %arg10[%c0_21, %c0_22] : memref<1x1024xf32, #tpu.memory_space<vmem>>, vector<1x1024xf32>
      %c0_23 = arith.constant 0 : index
      %c0_24 = arith.constant 0 : index
      %49 = vector.load %arg8[%c0_23, %c0_24] : memref<1x1024xf32, #tpu.memory_space<vmem>>, vector<1x1024xf32>
      %50 = arith.addf %48, %49 : vector<1x1024xf32>
      %cst_25 = arith.constant 0.000000e+00 : f32
      %51 = vector.broadcast %cst_25 : f32 to vector<1x1024xf32>
      %52 = arith.maximumf %50, %51 : vector<1x1024xf32>
      %c0_26 = arith.constant 0 : index
      %c0_27 = arith.constant 0 : index
      %c0_28 = arith.constant 0 : index
      %53 = vector.load %arg9[%c0_26, %c0_27, %c0_28] : memref<1x1x1024xf32, #tpu.memory_space<vmem>>, vector<1x1x1024xf32>
      %54 = vector.shape_cast %53 : vector<1x1x1024xf32> to vector<1x1024xf32>
      %55 = vector.shape_cast %52 : vector<1x1024xf32> to vector<1x1x1024xf32>
      tpu.vector_store %arg9[%c0_26, %c0_27, %c0_28], %55 {strides = array<i32>} : memref<1x1x1024xf32, #tpu.memory_space<vmem>>, vector<1x1x1024xf32>,
    } else {
    }
    return
  }
  func.func @transform_0(%arg0: i32, %arg1: i32) -> (i32, i32, i32) {
    %c0_i32 = arith.constant 0 : i32
    %c0_i32_0 = arith.constant 0 : i32
    return %arg0, %arg1, %c0_i32 : i32, i32, i32
  }
  func.func @transform_1(%arg0: i32, %arg1: i32) -> (i32, i32, i32) {
    %c0_i32 = arith.constant 0 : i32
    %c0_i32_0 = arith.constant 0 : i32
    %c0_i32_1 = arith.constant 0 : i32
    %c0_i32_2 = arith.constant 0 : i32
    return %c0_i32, %c0_i32_0, %c0_i32_1 : i32, i32, i32
  }
  func.func @transform_2(%arg0: i32, %arg1: i32) -> (i32, i32) {
    %c0_i32 = arith.constant 0 : i32
    %c0_i32_0 = arith.constant 0 : i32
    %c0_i32_1 = arith.constant 0 : i32
    return %c0_i32, %c0_i32_0 : i32, i32
  }
  func.func @transform_3(%arg0: i32, %arg1: i32) -> (i32, i32) {
    %c0_i32 = arith.constant 0 : i32
    %c0_i32_0 = arith.constant 0 : i32
    %c0_i32_1 = arith.constant 0 : i32
    return %c0_i32, %c0_i32_0 : i32, i32
  }
  func.func @transform_4(%arg0: i32, %arg1: i32) -> (i32, i32) {
    %c0_i32 = arith.constant 0 : i32
    %c0_i32_0 = arith.constant 0 : i32
    %c0_i32_1 = arith.constant 0 : i32
    return %c0_i32, %c0_i32_0 : i32, i32
  }
  func.func @transform_5(%arg0: i32, %arg1: i32) -> (i32, i32) {
    %c0_i32 = arith.constant 0 : i32
    %c0_i32_0 = arith.constant 0 : i32
    %c0_i32_1 = arith.constant 0 : i32
    return %c0_i32, %c0_i32_0 : i32, i32
  }
  func.func @transform_6(%arg0: i32, %arg1: i32) -> (i32, i32) {
    %c0_i32 = arith.constant 0 : i32
    %c0_i32_0 = arith.constant 0 : i32
    %c0_i32_1 = arith.constant 0 : i32
    return %c0_i32, %c0_i32_0 : i32, i32
  }
  func.func @transform_7(%arg0: i32, %arg1: i32) -> (i32, i32, i32) {
    %c0_i32 = arith.constant 0 : i32
    %c0_i32_0 = arith.constant 0 : i32
    %c0_i32_1 = arith.constant 0 : i32
    return %arg0, %c0_i32, %c0_i32_0 : i32, i32, i32
  }
}

</mosaic_0001>

<llo_original>
// kernel: tpu_custom_call.1
$region0: #{tpu_custom_call.1}
  #allocation0 [shape = 'u32[]', space=smem, size = 0x4, offset = 0x4, fixed_abs, tag = 'smem constant byte address 0x4 - core index']
  #allocation1 [shape = 'u32[144,128]{1,0:T(1,128)}', space=vmem, size = 0x12000, scoped, tag = 'internal scratch']
  #allocation2 [shape = 'f32[1,1024]{1,0:T(1,128)}', space=vmem, size = 0x1000, scoped, tag = 'scratch operand']
  %s0 = inlined_call_operand.vmem [shape: f32[2,256,3], index: 0, kind: input, shape index: {}]
  %s1 = inlined_call_operand.vmem [shape: f32[1,3,64], index: 1, kind: input, shape index: {}]
  %s2 = inlined_call_operand.vmem [shape: f32[1,64], index: 2, kind: input, shape index: {}]
  %s3 = inlined_call_operand.vmem [shape: bf16[64,128], index: 3, kind: input, shape index: {}]
  %s4 = inlined_call_operand.hbm [shape: f32[1,128], index: 4, kind: input, shape index: {}]
  %s5 = inlined_call_operand.vmem [shape: bf16[128,1024], index: 5, kind: input, shape index: {}]
  %s6 = inlined_call_operand.vmem [shape: f32[1,1024], index: 6, kind: input, shape index: {}]
  %s7 = inlined_call_operand.hbm [shape: f32[2,1,1024], index: 7, kind: output, shape index: {}]
  %s8 = sld [smem:[#allocation0]]
  $region77: #{tpu_custom_call.1} parent=0
    _
  %s10 = ssub.s32 1, %s8
  %s11 = scalar_select 0, %s10, %s8
  $region1: #{tpu_custom_call.1} parent=0
    #allocation3 [shape = 'u8[512]{0}', space=vmem, size = 0x400, scoped, tag = 'input window, operand 4, single buffered']
    #allocation4 [shape = 's32[2]{0}', space=sflag, size = 0x8, scoped, tag = 'scoped memory for tpu_custom_call.1']
    #allocation5 [shape = 's32[2]{0}', space=sflag, size = 0x8, scoped, tag = 'scoped memory for tpu_custom_call.1']
    #allocation6 [shape = 'u8[8192]{0}', space=vmem, size = 0x2000, scoped, tag = 'output window, operand 0']
    %12 = vsyncpa [#allocation4], 0
    %13 = vsyncpa [#allocation5], 0
    %s14 = scalar_lea.sflag [#allocation5], 1
    %15 = vsyncpa %s14, 0
    loop: start=0, step=1, limit=10
    $region2: #{tpu_custom_call.1} parent=1 // loop_pre_header
      _
    $region3: #{tpu_custom_call.1} parent=1 // loop_header
      %s17 = sphi 0, %s21
      %p18 = scmp.ge.s32.totalorder %s17, 10
      %s24 = sphi 0, %s36
      %s25 = sphi 0, %s32
      %s26 = sphi 0, %s24
      %s27 = sphi 0, %s25
      %s28 = sphi 0, %s26
      %s29 = sphi 0, %s27
      %s41 = sphi 0, %s43
      %s44 = sphi 0, %s41
      %s45 = sphi 0, %s44
      %s61 = sphi 0, %s45
      %s65 = sphi 0, %s65
      %s67 = sphi 0, %s65
      %s68 = sphi 0, %s67
      %s82 = sphi 0, %s68
      %s86 = sphi 0, %s86
      %s88 = sphi 0, %s86
      %s89 = sphi 0, %s88
      %s103 = sphi 0, %s89
      %s107 = sphi 0, %s107
      %s109 = sphi 0, %s107
      %s110 = sphi 0, %s109
      %s124 = sphi 0, %s110
      %s128 = sphi 0, %s128
      %s130 = sphi 0, %s128
      %s131 = sphi 0, %s130
      %s145 = sphi 0, %s131
      %s149 = sphi 0, %s149
      %s151 = sphi 0, %s149
      %s152 = sphi 0, %s151
      %s166 = sphi 0, %s152
      %s170 = sphi 0, %s170
      %s172 = sphi 0, %s170
      %s173 = sphi 0, %s172
      %s187 = sphi 0, %s173
      %s193 = sphi 0, %s195
      %s196 = sphi 0, %s193
      %s197 = sphi 0, %s196
      %s213 = sphi 0, %s197
    $region4: #{tpu_custom_call.1} parent=1 // loop_header_branch
      %20 = sbr.rel (%p18) target = $region8
    $region5: #{tpu_custom_call.1} parent=1 // loop_body
      %s22 = ssub.s32 %s17, 1
      %s23 = ssub.s32 %s17, 2
      %s30 = sadd.s32 1, %s25
      %p31 = scmp.ge.s32.totalorder %s30, 4
      %s32 = scalar_select %p31, 0, %s30
      %s33 = sadd.s32 1, %s24
      %s34 = scalar_select %p31, %s33, %s24
      %p35 = scmp.ge.s32.totalorder %s34, 2
      %s36 = scalar_select %p35, 0, %s34
      %s37 = ssub.s32 %s24, %s36
      %s38 = ssub.s32 %s25, %s32
      %s39 = sor.u32 %s37, %s38
      %p40 = scmp.eq.s32.totalorder %s39, 0
      %s42 = sadd.s32 %s41, 1
      %s43 = scalar_select %p40, %s41, %s42
      %p46 = pneg %p40
      %p47 = scmp.eq.s32.totalorder %s17, 7
      %p48 = por %p46, %p47
      %p49 = scmp.ne.s32.totalorder %s41, %s44
      %p50 = scmp.eq.s32.totalorder %s17, 0
      %p51 = por %p49, %p50
      %p52 = scmp.ne.s32.totalorder %s41, %s44
      %p53 = scmp.eq.s32.totalorder %s22, 7
      %p54 = por %p52, %p53
      %p55 = scmp.ne.s32.totalorder %s44, %s45
      %p56 = scmp.eq.s32.totalorder %s22, 0
      %p57 = por %p55, %p56
      %p58 = scmp.ne.s32.totalorder %s44, %s45
      %p59 = scmp.eq.s32.totalorder %s23, 7
      %p60 = por %p58, %p59
      %p62 = scmp.ne.s32.totalorder %s45, %s61
      %p63 = scmp.eq.s32.totalorder %s23, 0
      %p64 = por %p62, %p63
      %s66 = sadd.s32 %s65, 1
      %p69 = scmp.eq.s32.totalorder %s17, 7
      %p70 = scmp.ne.s32.totalorder %s65, %s67
      %p71 = scmp.eq.s32.totalorder %s17, 0
      %p72 = por %p70, %p71
      %p73 = scmp.ne.s32.totalorder %s65, %s67
      %p74 = scmp.eq.s32.totalorder %s22, 7
      %p75 = por %p73, %p74
      %p76 = scmp.ne.s32.totalorder %s67, %s68
      %p77 = scmp.eq.s32.totalorder %s22, 0
      %p78 = por %p76, %p77
      %p79 = scmp.ne.s32.totalorder %s67, %s68
      %p80 = scmp.eq.s32.totalorder %s23, 7
      %p81 = por %p79, %p80
      %p83 = scmp.ne.s32.totalorder %s68, %s82
      %p84 = scmp.eq.s32.totalorder %s23, 0
      %p85 = por %p83, %p84
      %s87 = sadd.s32 %s86, 1
      %p90 = scmp.eq.s32.totalorder %s17, 7
      %p91 = scmp.ne.s32.totalorder %s86, %s88
      %p92 = scmp.eq.s32.totalorder %s17, 0
      %p93 = por %p91, %p92
      %p94 = scmp.ne.s32.totalorder %s86, %s88
      %p95 = scmp.eq.s32.totalorder %s22, 7
      %p96 = por %p94, %p95
      %p97 = scmp.ne.s32.totalorder %s88, %s89
      %p98 = scmp.eq.s32.totalorder %s22, 0
      %p99 = por %p97, %p98
      %p100 = scmp.ne.s32.totalorder %s88, %s89
      %p101 = scmp.eq.s32.totalorder %s23, 7
      %p102 = por %p100, %p101
      %p104 = scmp.ne.s32.totalorder %s89, %s103
      %p105 = scmp.eq.s32.totalorder %s23, 0
      %p106 = por %p104, %p105
      %s108 = sadd.s32 %s107, 1
      %p111 = scmp.eq.s32.totalorder %s17, 7
      %p112 = scmp.ne.s32.totalorder %s107, %s109
      %p113 = scmp.eq.s32.totalorder %s17, 0
      %p114 = por %p112, %p113
      %p115 = scmp.ne.s32.totalorder %s107, %s109
      %p116 = scmp.eq.s32.totalorder %s22, 7
      %p117 = por %p115, %p116
      %p118 = scmp.ne.s32.totalorder %s109, %s110
      %p119 = scmp.eq.s32.totalorder %s22, 0
      %p120 = por %p118, %p119
      %p121 = scmp.ne.s32.totalorder %s109, %s110
      %p122 = scmp.eq.s32.totalorder %s23, 7
      %p123 = por %p121, %p122
      %p125 = scmp.ne.s32.totalorder %s110, %s124
      %p126 = scmp.eq.s32.totalorder %s23, 0
      %p127 = por %p125, %p126
      %s129 = sadd.s32 %s128, 1
      %p132 = scmp.eq.s32.totalorder %s17, 7
      %p133 = scmp.ne.s32.totalorder %s128, %s130
      %p134 = scmp.eq.s32.totalorder %s17, 0
      %p135 = por %p133, %p134
      %p136 = scmp.ne.s32.totalorder %s128, %s130
      %p137 = scmp.eq.s32.totalorder %s22, 7
      %p138 = por %p136, %p137
      %p139 = scmp.ne.s32.totalorder %s130, %s131
      %p140 = scmp.eq.s32.totalorder %s22, 0
      %p141 = por %p139, %p140
      %p142 = scmp.ne.s32.totalorder %s130, %s131
      %p143 = scmp.eq.s32.totalorder %s23, 7
      %p144 = por %p142, %p143
      %p146 = scmp.ne.s32.totalorder %s131, %s145
      %p147 = scmp.eq.s32.totalorder %s23, 0
      %p148 = por %p146, %p147
      %s150 = sadd.s32 %s149, 1
      %p153 = scmp.eq.s32.totalorder %s17, 7
      %p154 = scmp.ne.s32.totalorder %s149, %s151
      %p155 = scmp.eq.s32.totalorder %s17, 0
      %p156 = por %p154, %p155
      %p157 = scmp.ne.s32.totalorder %s149, %s151
      %p158 = scmp.eq.s32.totalorder %s22, 7
      %p159 = por %p157, %p158
      %p160 = scmp.ne.s32.totalorder %s151, %s152
      %p161 = scmp.eq.s32.totalorder %s22, 0
      %p162 = por %p160, %p161
      %p163 = scmp.ne.s32.totalorder %s151, %s152
      %p164 = scmp.eq.s32.totalorder %s23, 7
      %p165 = por %p163, %p164
      %p167 = scmp.ne.s32.totalorder %s152, %s166
      %p168 = scmp.eq.s32.totalorder %s23, 0
      %p169 = por %p167, %p168
      %s171 = sadd.s32 %s170, 1
      %p174 = scmp.eq.s32.totalorder %s17, 7
      %p175 = scmp.ne.s32.totalorder %s170, %s172
      %p176 = scmp.eq.s32.totalorder %s17, 0
      %p177 = por %p175, %p176
      %p178 = scmp.ne.s32.totalorder %s170, %s172
      %p179 = scmp.eq.s32.totalorder %s22, 7
      %p180 = por %p178, %p179
      %p181 = scmp.ne.s32.totalorder %s172, %s173
      %p182 = scmp.eq.s32.totalorder %s22, 0
      %p183 = por %p181, %p182
      %p184 = scmp.ne.s32.totalorder %s172, %s173
      %p185 = scmp.eq.s32.totalorder %s23, 7
      %p186 = por %p184, %p185
      %p188 = scmp.ne.s32.totalorder %s173, %s187
      %p189 = scmp.eq.s32.totalorder %s23, 0
      %p190 = por %p188, %p189
      %s191 = ssub.s32 %s24, %s36
      %p192 = scmp.eq.s32.totalorder %s191, 0
      %s194 = sadd.s32 %s193, 1
      %s195 = scalar_select %p192, %s193, %s194
      %p198 = pneg %p192
      %p199 = scmp.eq.s32.totalorder %s17, 7
      %p200 = por %p198, %p199
      %p201 = scmp.ne.s32.totalorder %s193, %s196
      %p202 = scmp.eq.s32.totalorder %s17, 0
      %p203 = por %p201, %p202
      %p204 = scmp.ne.s32.totalorder %s193, %s196
      %p205 = scmp.eq.s32.totalorder %s22, 7
      %p206 = por %p204, %p205
      %p207 = scmp.ne.s32.totalorder %s196, %s197
      %p208 = scmp.eq.s32.totalorder %s22, 0
      %p209 = por %p207, %p208
      %p210 = scmp.ne.s32.totalorder %s196, %s197
      %p211 = scmp.eq.s32.totalorder %s23, 7
      %p212 = por %p210, %p211
      %p214 = scmp.ne.s32.totalorder %s197, %s213
      %p215 = scmp.eq.s32.totalorder %s23, 0
      %p216 = por %p214, %p215
      %p217 = scmp.le.s32.totalorder 1, %s17
      %p218 = scmp.lt.s32.totalorder %s17, 9
      %p219 = pnand %p217, %p218
      %p220 = pneg %p219
      // Predicated region
      $region9: #{tpu_custom_call.1} parent=5 // pred_check
        _
      $region10: #{tpu_custom_call.1} parent=5 // pred_check_branch
        %222 = sbr.rel (%p219) target = $region12
      $region11: #{tpu_custom_call.1} parent=5 // pred_region
        %s223 = ssub.s32 %s17, 1
        // Predicated region
        $region13: #{tpu_custom_call.1} parent=11 // pred_check
          %p224 = pneg %p78
        $region14: #{tpu_custom_call.1} parent=11 // pred_check_branch
          %226 = sbr.rel (%p224) target = $region16
        $region15: #{tpu_custom_call.1} parent=11 // pred_region
          _
        $region16: #{tpu_custom_call.1} parent=11 // pred_fallthru
          _
        // Predicated region
        $region17: #{tpu_custom_call.1} parent=11 // pred_check
          %p227 = pneg %p99
        $region18: #{tpu_custom_call.1} parent=11 // pred_check_branch
          %229 = sbr.rel (%p227) target = $region20
        $region19: #{tpu_custom_call.1} parent=11 // pred_region
          _
        $region20: #{tpu_custom_call.1} parent=11 // pred_fallthru
          _
        // Predicated region
        $region21: #{tpu_custom_call.1} parent=11 // pred_check
          %p230 = pneg %p120
        $region22: #{tpu_custom_call.1} parent=11 // pred_check_branch
          %232 = sbr.rel (%p230) target = $region24
        $region23: #{tpu_custom_call.1} parent=11 // pred_region
          _
        $region24: #{tpu_custom_call.1} parent=11 // pred_fallthru
          _
        // Predicated region
        $region25: #{tpu_custom_call.1} parent=11 // pred_check
          %p233 = pneg %p141
        $region26: #{tpu_custom_call.1} parent=11 // pred_check_branch
          %235 = sbr.rel (%p233) target = $region28
        $region27: #{tpu_custom_call.1} parent=11 // pred_region
          %s237 = ssub.s32 16, 16
          %238 = vsyncadd [#allocation4], %s237
          %s240 = sshll.u32 [#allocation3], 4
          %s241 = int_to_ptr.vmem [resolvable:$true] %s240
          %243 = dma.hbm_to_vmem [thread:$0]  %s4, 16, %s241, [#allocation4]
        $region28: #{tpu_custom_call.1} parent=11 // pred_fallthru
          _
        // Predicated region
        $region29: #{tpu_custom_call.1} parent=11 // pred_check
          %p244 = pneg %p162
        $region30: #{tpu_custom_call.1} parent=11 // pred_check_branch
          %246 = sbr.rel (%p244) target = $region32
        $region31: #{tpu_custom_call.1} parent=11 // pred_region
          _
        $region32: #{tpu_custom_call.1} parent=11 // pred_fallthru
          _
        // Predicated region
        $region33: #{tpu_custom_call.1} parent=11 // pred_check
          %p247 = pneg %p183
        $region34: #{tpu_custom_call.1} parent=11 // pred_check_branch
          %249 = sbr.rel (%p247) target = $region36
        $region35: #{tpu_custom_call.1} parent=11 // pred_region
          _
        $region36: #{tpu_custom_call.1} parent=11 // pred_fallthru
          _
      $region12: #{tpu_custom_call.1} parent=5 // pred_fallthru
        _
      %p250 = scmp.lt.s32.totalorder %s17, 8
      // Predicated region
      $region37: #{tpu_custom_call.1} parent=5 // pred_check
        %p251 = pneg %p250
      $region38: #{tpu_custom_call.1} parent=5 // pred_check_branch
        %253 = sbr.rel (%p251) target = $region40
      $region39: #{tpu_custom_call.1} parent=5 // pred_region
        // Predicated region
        $region41: #{tpu_custom_call.1} parent=39 // pred_check
          %p254 = pneg %p51
        $region42: #{tpu_custom_call.1} parent=39 // pred_check_branch
          %256 = sbr.rel (%p254) target = $region44
        $region43: #{tpu_custom_call.1} parent=39 // pred_region
          %s257 = smul.u32 8, %s25
          %p258 = scmp.lt.s32.totalorder %s24, 1
          %s259 = scalar_select %p258, %s24, 1
          %p260 = scmp.lt.s32.totalorder %s257, 31
          %s261 = scalar_select %p260, %s257, 31
          %s262 = smul.addr %s259, 32
          %s263 = sadd.s32 %s261, %s262
          %s264 = smul.addr %s263, 8
          %s265 = scalar_lea.vmem %s0, %s264
          %s266 = smul.u32 8, %s25
        $region44: #{tpu_custom_call.1} parent=39 // pred_fallthru
          _
      $region40: #{tpu_custom_call.1} parent=5 // pred_fallthru
        _
      %p267 = scmp.le.s32.totalorder 1, %s17
      %p268 = scmp.lt.s32.totalorder %s17, 9
      %p269 = pnand %p267, %p268
      %p270 = pneg %p269
      // Predicated region
      $region45: #{tpu_custom_call.1} parent=5 // pred_check
        _
      $region46: #{tpu_custom_call.1} parent=5 // pred_check_branch
        %272 = sbr.rel (%p269) target = $region48
      $region47: #{tpu_custom_call.1} parent=5 // pred_region
        %s273 = ssub.s32 %s17, 1
        // Predicated region
        $region49: #{tpu_custom_call.1} parent=47 // pred_check
          %p274 = pneg %p141
        $region50: #{tpu_custom_call.1} parent=47 // pred_check_branch
          %276 = sbr.rel (%p274) target = $region52
        $region51: #{tpu_custom_call.1} parent=47 // pred_region
          %277 = dma.done [#allocation4], 16
        $region52: #{tpu_custom_call.1} parent=47 // pred_fallthru
          _
        %s278 = smul.u32 8, %s27
        %p279 = scmp.lt.s32.totalorder %s26, 1
        %s280 = scalar_select %p279, %s26, 1
        %p281 = scmp.lt.s32.totalorder %s278, 31
        %s282 = scalar_select %p281, %s278, 31
        %s283 = smul.addr %s280, 32
        %s284 = sadd.s32 %s282, %s283
        %s285 = smul.addr %s284, 8
        %s286 = scalar_lea.vmem %s0, %s285
        %p287 = pneg %p57
        %p288 = pneg %p54
        %p289 = pneg %p78
        %p290 = pneg %p75
        %p291 = pneg %p99
        %p292 = pneg %p96
        %p293 = pneg %p120
        %p294 = pneg %p117
        %p295 = pneg %p141
        %p296 = pneg %p138
        %p297 = pneg %p162
        %p298 = pneg %p159
        %p299 = pneg %p183
        %p300 = pneg %p180
        %p301 = pneg %p209
        %p302 = pneg %p206
        %s303 = sand.u32 %s196, 1
        %s304 = scalar_lea.sflag [#allocation5], %s303
        %s305 = sand.u32 %s196, 1
        %s306 = smul.addr %s305, 8
        %s307 = scalar_lea.vmem [#allocation6], %s306
        %s308 = smul.u32 8, %s27
        %p309 = scmp.lt.s32.totalorder %s26, 1
        %s310 = scalar_select %p309, %s26, 1
        %p311 = scmp.lt.s32.totalorder %s308, 31
        %s312 = scalar_select %p311, %s308, 31
        %s313 = smul.addr %s310, 32
        %s314 = sadd.s32 %s312, %s313
        %s315 = smul.addr %s314, 8
        %s316 = scalar_lea.vmem %s0, %s315
        %s317 = smul.u32 8, %s27
        %v319 = vld [vmem:[%s316] sm:$0xff]
        %v320 = vld [vmem:[%s316 + $0x8] sm:$0xff]
        %v321 = vld [vmem:[%s316 + $0x10] sm:$0xff]
        %v322 = vld [vmem:[%s316 + $0x18] sm:$0xff]
        %v323 = vld [vmem:[%s316 + $0x20] sm:$0xff]
        %v324 = vld [vmem:[%s316 + $0x28] sm:$0xff]
        %v325 = vld [vmem:[%s316 + $0x30] sm:$0xff]
        %v326 = vld [vmem:[%s316 + $0x38] sm:$0xff]
        %v327 = vld [vmem:[%s1] sm:$0x7]
        %329 = vset.pattern.permute.xlu0 0
        %330 = vperm.xlu0 %329, %v319
        %v331 = vpop.permute.xlu0 %330
        %334 = vset.pattern.permute.xlu0 0
        %335 = vperm.xlu0 %334, %v320
        %v336 = vpop.permute.xlu0 %335
        %339 = vset.pattern.permute.xlu0 0
        %340 = vperm.xlu0 %339, %v321
        %v341 = vpop.permute.xlu0 %340
        %344 = vset.pattern.permute.xlu0 0
        %345 = vperm.xlu0 %344, %v322
        %v346 = vpop.permute.xlu0 %345
        %349 = vset.pattern.permute.xlu0 0
        %350 = vperm.xlu0 %349, %v323
        %v351 = vpop.permute.xlu0 %350
        %354 = vset.pattern.permute.xlu0 0
        %355 = vperm.xlu0 %354, %v324
        %v356 = vpop.permute.xlu0 %355
        %359 = vset.pattern.permute.xlu0 0
        %360 = vperm.xlu0 %359, %v325
        %v361 = vpop.permute.xlu0 %360
        %364 = vset.pattern.permute.xlu0 0
        %365 = vperm.xlu0 %364, %v326
        %v366 = vpop.permute.xlu0 %365
        %v368 = vlaneseq
        %v369 = vshrl.u32 %v368, 7
        %v370 = vsub.s32 0, %v369
        %v371 = vrot.slane %v327, %v370
        %v372 = vmul.f32 %v331, %v371
        %v373 = vmul.f32 %v336, %v371
        %v374 = vmul.f32 %v341, %v371
        %v375 = vmul.f32 %v346, %v371
        %v376 = vmul.f32 %v351, %v371
        %v377 = vmul.f32 %v356, %v371
        %v378 = vmul.f32 %v361, %v371
        %v379 = vmul.f32 %v366, %v371
        %380 = vset.pattern.permute.xlu0 1
        %381 = vperm.xlu0 %380, %v319
        %v382 = vpop.permute.xlu0 %381
        %384 = vset.pattern.permute.xlu0 1
        %385 = vperm.xlu0 %384, %v320
        %v386 = vpop.permute.xlu0 %385
        %388 = vset.pattern.permute.xlu0 1
        %389 = vperm.xlu0 %388, %v321
        %v390 = vpop.permute.xlu0 %389
        %392 = vset.pattern.permute.xlu0 1
        %393 = vperm.xlu0 %392, %v322
        %v394 = vpop.permute.xlu0 %393
        %396 = vset.pattern.permute.xlu0 1
        %397 = vperm.xlu0 %396, %v323
        %v398 = vpop.permute.xlu0 %397
        %400 = vset.pattern.permute.xlu0 1
        %401 = vperm.xlu0 %400, %v324
        %v402 = vpop.permute.xlu0 %401
        %404 = vset.pattern.permute.xlu0 1
        %405 = vperm.xlu0 %404, %v325
        %v406 = vpop.permute.xlu0 %405
        %408 = vset.pattern.permute.xlu0 1
        %409 = vperm.xlu0 %408, %v326
        %v410 = vpop.permute.xlu0 %409
        %v412 = vlaneseq
        %v413 = vshrl.u32 %v412, 7
        %v414 = vsub.s32 1, %v413
        %v415 = vrot.slane %v327, %v414
        %v416 = vmul.f32 %v382, %v415
        %v417 = vmul.f32 %v386, %v415
        %v418 = vmul.f32 %v390, %v415
        %v419 = vmul.f32 %v394, %v415
        %v420 = vmul.f32 %v398, %v415
        %v421 = vmul.f32 %v402, %v415
        %v422 = vmul.f32 %v406, %v415
        %v423 = vmul.f32 %v410, %v415
        %v424 = vadd.f32 %v372, %v416
        %v425 = vadd.f32 %v373, %v417
        %v426 = vadd.f32 %v374, %v418
        %v427 = vadd.f32 %v375, %v419
        %v428 = vadd.f32 %v376, %v420
        %v429 = vadd.f32 %v377, %v421
        %v430 = vadd.f32 %v378, %v422
        %v431 = vadd.f32 %v379, %v423
        %432 = vset.pattern.permute.xlu0 2
        %433 = vperm.xlu0 %432, %v319
        %v434 = vpop.permute.xlu0 %433
        %436 = vset.pattern.permute.xlu0 2
        %437 = vperm.xlu0 %436, %v320
        %v438 = vpop.permute.xlu0 %437
        %440 = vset.pattern.permute.xlu0 2
        %441 = vperm.xlu0 %440, %v321
        %v442 = vpop.permute.xlu0 %441
        %444 = vset.pattern.permute.xlu0 2
        %445 = vperm.xlu0 %444, %v322
        %v446 = vpop.permute.xlu0 %445
        %448 = vset.pattern.permute.xlu0 2
        %449 = vperm.xlu0 %448, %v323
        %v450 = vpop.permute.xlu0 %449
        %452 = vset.pattern.permute.xlu0 2
        %453 = vperm.xlu0 %452, %v324
        %v454 = vpop.permute.xlu0 %453
        %456 = vset.pattern.permute.xlu0 2
        %457 = vperm.xlu0 %456, %v325
        %v458 = vpop.permute.xlu0 %457
        %460 = vset.pattern.permute.xlu0 2
        %461 = vperm.xlu0 %460, %v326
        %v462 = vpop.permute.xlu0 %461
        %v464 = vlaneseq
        %v465 = vshrl.u32 %v464, 7
        %v466 = vsub.s32 2, %v465
        %v467 = vrot.slane %v327, %v466
        %v468 = vmul.f32 %v434, %v467
        %v469 = vmul.f32 %v438, %v467
        %v470 = vmul.f32 %v442, %v467
        %v471 = vmul.f32 %v446, %v467
        %v472 = vmul.f32 %v450, %v467
        %v473 = vmul.f32 %v454, %v467
        %v474 = vmul.f32 %v458, %v467
        %v475 = vmul.f32 %v462, %v467
        %v476 = vadd.f32 %v424, %v468
        %v477 = vadd.f32 %v425, %v469
        %v478 = vadd.f32 %v426, %v470
        %v479 = vadd.f32 %v427, %v471
        %v480 = vadd.f32 %v428, %v472
        %v481 = vadd.f32 %v429, %v473
        %v482 = vadd.f32 %v430, %v474
        %v483 = vadd.f32 %v431, %v475
        %v484 = vld [vmem:[%s2] sm:$0x1]
        %v486 = vlaneseq
        %v487 = vshrl.u32 %v486, 7
        %v488 = vsub.s32 0, %v487
        %v489 = vrot.slane %v484, %v488
        %v491 = vadd.f32 %v476, %v489
        %v492 = vadd.f32 %v477, %v489
        %v493 = vadd.f32 %v478, %v489
        %v494 = vadd.f32 %v479, %v489
        %v495 = vadd.f32 %v480, %v489
        %v496 = vadd.f32 %v481, %v489
        %v497 = vadd.f32 %v482, %v489
        %v498 = vadd.f32 %v483, %v489
        %v499 = vmax.f32 %v491, 0.0
        %v500 = vmax.f32 %v492, 0.0
        %v501 = vmax.f32 %v493, 0.0
        %v502 = vmax.f32 %v494, 0.0
        %v503 = vmax.f32 %v495, 0.0
        %v504 = vmax.f32 %v496, 0.0
        %v505 = vmax.f32 %v497, 0.0
        %v506 = vmax.f32 %v498, 0.0
        %v507 = vpack.c.bf16 %v500, %v499
        %v508 = vpack.c.bf16 %v502, %v501
        %v509 = vpack.c.bf16 %v504, %v503
        %v510 = vpack.c.bf16 %v506, %v505
        %v511 = vld [vmem:[%s3] sm:$0xf]
        %v512 = vld [vmem:[%s3 + $0x4] sm:$0xf]
        %v513 = vld [vmem:[%s3 + $0x8] sm:$0xf]
        %v514 = vld [vmem:[%s3 + $0xc] sm:$0xf]
        %v515 = vld [vmem:[%s3 + $0x10] sm:$0xf]
        %v516 = vld [vmem:[%s3 + $0x14] sm:$0xf]
        %v517 = vld [vmem:[%s3 + $0x18] sm:$0xf]
        %v518 = vld [vmem:[%s3 + $0x1c] sm:$0xf]
        %v519 = vld [vmem:[#allocation3] sm:$0x1]
        %v521 = vlaneseq
        %v522 = vshrl.u32 %v521, 7
        %v523 = vsub.s32 0, %v522
        %v524 = vrot.slane %v519, %v523
        %v534 = vunpack.c.l.b16 %v511
        %v535 = vunpack.c.l.b16 %v512
        %v536 = vunpack.c.l.b16 %v513
        %v537 = vunpack.c.l.b16 %v514
        %v538 = vunpack.c.l.b16 %v515
        %v539 = vunpack.c.l.b16 %v516
        %v540 = vunpack.c.l.b16 %v517
        %v541 = vunpack.c.l.b16 %v518
        %v542 = vpack.c.b16 %v535, %v534
        %v543 = vpack.c.b16 %v537, %v536
        %v544 = vpack.c.b16 %v539, %v538
        %v545 = vpack.c.b16 %v541, %v540
        %vm550 = vcmask 523264
        %v552 = vsel %vm550, %v507, 0
        %v555 = vsel %vm550, %v508, 0
        %v558 = vsel %vm550, %v509, 0
        %v561 = vsel %vm550, %v510, 0
        %563 = vmatprep.subr.bf16.mxu0 0
        %564 = vmatpush1.bf16.msra.mxu0 %v542
        %565 = vmatprep.subr.bf16.mxu0 0
        %566 = vmatpush1.bf16.msra.mxu0 %v543
        %567 = vmatprep.subr.bf16.mxu0 0
        %568 = vmatpush1.bf16.msra.mxu0 %v544
        %569 = vmatprep.subr.bf16.mxu0 0
        %570 = vmatpush1.bf16.msra.mxu0 %v545
        %571 = vmatprep.subr.bf16.mxu0 0
        %572 = vmatpush1.bf16.msra.mxu0 0
        %573 = vmatprep.subr.bf16.mxu0 0
        %574 = vmatpush1.bf16.msra.mxu0 0
        %575 = vmatprep.subr.bf16.mxu0 0
        %576 = vmatpush1.bf16.msra.mxu0 0
        %577 = vmatprep.subr.bf16.mxu0 0
        %578 = vmatpush1.bf16.msra.mxu0 0
        %579 = vmatprep.subr.bf16.mxu0 0
        %580 = vmatpush1.bf16.msra.mxu0 0
        %581 = vmatprep.subr.bf16.mxu0 0
        %582 = vmatpush1.bf16.msra.mxu0 0
        %583 = vmatprep.subr.bf16.mxu0 0
        %584 = vmatpush1.bf16.msra.mxu0 0
        %585 = vmatprep.subr.bf16.mxu0 0
        %586 = vmatpush1.bf16.msra.mxu0 0
        %587 = vmatprep.subr.bf16.mxu0 0
        %588 = vmatpush1.bf16.msra.mxu0 0
        %589 = vmatprep.subr.bf16.mxu0 0
        %590 = vmatpush1.bf16.msra.mxu0 0
        %591 = vmatprep.subr.bf16.mxu0 0
        %592 = vmatpush1.bf16.msra.mxu0 0
        %593 = vmatprep.subr.bf16.mxu0 0
        %594 = vmatpush1.bf16.msra.mxu0 0
        %595 = vmatprep.mubr.bf16.mxu0 0
        %596 = vmatmul.mubr.bf16.gmra.mrb[0].mxu0 %v552
        %v597 = vpop.f32.mrb[0].mxu0
        %v598 = vadd.f32 %v524, %v597
        %v599 = vpop.f32.mrb[0].mxu0
        %v600 = vpop.f32.mrb[0].mxu0
        %v601 = vadd.f32 %v524, %v600
        %v602 = vpop.f32.mrb[0].mxu0
        %603 = vmatprep.mubr.bf16.mxu0 0
        %604 = vmatmul.mubr.bf16.gmra.mrb[0].mxu0 %v555
        %v605 = vpop.f32.mrb[0].mxu0
        %v606 = vadd.f32 %v524, %v605
        %v607 = vpop.f32.mrb[0].mxu0
        %v608 = vpop.f32.mrb[0].mxu0
        %v609 = vadd.f32 %v524, %v608
        %v610 = vpop.f32.mrb[0].mxu0
        %611 = vmatprep.mubr.bf16.mxu0 0
        %612 = vmatmul.mubr.bf16.gmra.mrb[0].mxu0 %v558
        %v613 = vpop.f32.mrb[0].mxu0
        %v614 = vadd.f32 %v524, %v613
        %v615 = vpop.f32.mrb[0].mxu0
        %v616 = vpop.f32.mrb[0].mxu0
        %v617 = vadd.f32 %v524, %v616
        %v618 = vpop.f32.mrb[0].mxu0
        %619 = vmatprep.mubr.bf16.mxu0 0
        %620 = vmatmul.mubr.bf16.gmra.mrb[0].mxu0 %v561
        %v621 = vpop.f32.mrb[0].mxu0
        %v622 = vadd.f32 %v524, %v621
        %v623 = vpop.f32.mrb[0].mxu0
        %v624 = vpop.f32.mrb[0].mxu0
        %v625 = vadd.f32 %v524, %v624
        %v626 = vpop.f32.mrb[0].mxu0
        %627 = vdwg.mxu0
        %v628 = vmax.f32 %v598, 0.0
        %v629 = vmax.f32 %v601, 0.0
        %v630 = vmax.f32 %v606, 0.0
        %v631 = vmax.f32 %v609, 0.0
        %v632 = vmax.f32 %v614, 0.0
        %v633 = vmax.f32 %v617, 0.0
        %v634 = vmax.f32 %v622, 0.0
        %v635 = vmax.f32 %v625, 0.0
        %v636 = vpack.c.bf16 %v629, %v628
        %v637 = vpack.c.bf16 %v631, %v630
        %v638 = vpack.c.bf16 %v633, %v632
        %v639 = vpack.c.bf16 %v635, %v634
        %v640 = vld [vmem:[%s5] sm:$0xff]
        %v641 = vld [vmem:[%s5 + $0x8] sm:$0xff]
        %v642 = vld [vmem:[%s5 + $0x10] sm:$0xff]
        %v643 = vld [vmem:[%s5 + $0x18] sm:$0xff]
        %v644 = vld [vmem:[%s5 + $0x20] sm:$0xff]
        %v645 = vld [vmem:[%s5 + $0x28] sm:$0xff]
        %v646 = vld [vmem:[%s5 + $0x30] sm:$0xff]
        %v647 = vld [vmem:[%s5 + $0x38] sm:$0xff]
        %v648 = vld [vmem:[%s5 + $0x40] sm:$0xff]
        %v649 = vld [vmem:[%s5 + $0x48] sm:$0xff]
        %v650 = vld [vmem:[%s5 + $0x50] sm:$0xff]
        %v651 = vld [vmem:[%s5 + $0x58] sm:$0xff]
        %v652 = vld [vmem:[%s5 + $0x60] sm:$0xff]
        %v653 = vld [vmem:[%s5 + $0x68] sm:$0xff]
        %v654 = vld [vmem:[%s5 + $0x70] sm:$0xff]
        %v655 = vld [vmem:[%s5 + $0x78] sm:$0xff]
        %v656 = vld [vmem:[%s5 + $0x80] sm:$0xff]
        %v657 = vld [vmem:[%s5 + $0x88] sm:$0xff]
        %v658 = vld [vmem:[%s5 + $0x90] sm:$0xff]
        %v659 = vld [vmem:[%s5 + $0x98] sm:$0xff]
        %v660 = vld [vmem:[%s5 + $0xa0] sm:$0xff]
        %v661 = vld [vmem:[%s5 + $0xa8] sm:$0xff]
        %v662 = vld [vmem:[%s5 + $0xb0] sm:$0xff]
        %v663 = vld [vmem:[%s5 + $0xb8] sm:$0xff]
        %v664 = vld [vmem:[%s5 + $0xc0] sm:$0xff]
        %v665 = vld [vmem:[%s5 + $0xc8] sm:$0xff]
        %v666 = vld [vmem:[%s5 + $0xd0] sm:$0xff]
        %v667 = vld [vmem:[%s5 + $0xd8] sm:$0xff]
        %v668 = vld [vmem:[%s5 + $0xe0] sm:$0xff]
        %v669 = vld [vmem:[%s5 + $0xe8] sm:$0xff]
        %v670 = vld [vmem:[%s5 + $0xf0] sm:$0xff]
        %v671 = vld [vmem:[%s5 + $0xf8] sm:$0xff]
        %v672 = vld [vmem:[%s5 + $0x100] sm:$0xff]
        %v673 = vld [vmem:[%s5 + $0x108] sm:$0xff]
        %v674 = vld [vmem:[%s5 + $0x110] sm:$0xff]
        %v675 = vld [vmem:[%s5 + $0x118] sm:$0xff]
        %v676 = vld [vmem:[%s5 + $0x120] sm:$0xff]
        %v677 = vld [vmem:[%s5 + $0x128] sm:$0xff]
        %v678 = vld [vmem:[%s5 + $0x130] sm:$0xff]
        %v679 = vld [vmem:[%s5 + $0x138] sm:$0xff]
        %v680 = vld [vmem:[%s5 + $0x140] sm:$0xff]
        %v681 = vld [vmem:[%s5 + $0x148] sm:$0xff]
        %v682 = vld [vmem:[%s5 + $0x150] sm:$0xff]
        %v683 = vld [vmem:[%s5 + $0x158] sm:$0xff]
        %v684 = vld [vmem:[%s5 + $0x160] sm:$0xff]
        %v685 = vld [vmem:[%s5 + $0x168] sm:$0xff]
        %v686 = vld [vmem:[%s5 + $0x170] sm:$0xff]
        %v687 = vld [vmem:[%s5 + $0x178] sm:$0xff]
        %v688 = vld [vmem:[%s5 + $0x180] sm:$0xff]
        %v689 = vld [vmem:[%s5 + $0x188] sm:$0xff]
        %v690 = vld [vmem:[%s5 + $0x190] sm:$0xff]
        %v691 = vld [vmem:[%s5 + $0x198] sm:$0xff]
        %v692 = vld [vmem:[%s5 + $0x1a0] sm:$0xff]
        %v693 = vld [vmem:[%s5 + $0x1a8] sm:$0xff]
        %v694 = vld [vmem:[%s5 + $0x1b0] sm:$0xff]
        %v695 = vld [vmem:[%s5 + $0x1b8] sm:$0xff]
        %v696 = vld [vmem:[%s5 + $0x1c0] sm:$0xff]
        %v697 = vld [vmem:[%s5 + $0x1c8] sm:$0xff]
        %v698 = vld [vmem:[%s5 + $0x1d0] sm:$0xff]
        %v699 = vld [vmem:[%s5 + $0x1d8] sm:$0xff]
        %v700 = vld [vmem:[%s5 + $0x1e0] sm:$0xff]
        %v701 = vld [vmem:[%s5 + $0x1e8] sm:$0xff]
        %v702 = vld [vmem:[%s5 + $0x1f0] sm:$0xff]
        %v703 = vld [vmem:[%s5 + $0x1f8] sm:$0xff]
        %v768 = vunpack.c.l.b16 %v640
        %v769 = vunpack.c.h.b16 %v640
        %v770 = vunpack.c.l.b16 %v641
        %v771 = vunpack.c.h.b16 %v641
        %v772 = vunpack.c.l.b16 %v642
        %v773 = vunpack.c.h.b16 %v642
        %v774 = vunpack.c.l.b16 %v643
        %v775 = vunpack.c.h.b16 %v643
        %v776 = vunpack.c.l.b16 %v644
        %v777 = vunpack.c.h.b16 %v644
        %v778 = vunpack.c.l.b16 %v645
        %v779 = vunpack.c.h.b16 %v645
        %v780 = vunpack.c.l.b16 %v646
        %v781 = vunpack.c.h.b16 %v646
        %v782 = vunpack.c.l.b16 %v647
        %v783 = vunpack.c.h.b16 %v647
        %v784 = vunpack.c.l.b16 %v648
        %v785 = vunpack.c.h.b16 %v648
        %v786 = vunpack.c.l.b16 %v649
        %v787 = vunpack.c.h.b16 %v649
        %v788 = vunpack.c.l.b16 %v650
        %v789 = vunpack.c.h.b16 %v650
        %v790 = vunpack.c.l.b16 %v651
        %v791 = vunpack.c.h.b16 %v651
        %v792 = vunpack.c.l.b16 %v652
        %v793 = vunpack.c.h.b16 %v652
        %v794 = vunpack.c.l.b16 %v653
        %v795 = vunpack.c.h.b16 %v653
        %v796 = vunpack.c.l.b16 %v654
        %v797 = vunpack.c.h.b16 %v654
        %v798 = vunpack.c.l.b16 %v655
        %v799 = vunpack.c.h.b16 %v655
        %v800 = vunpack.c.l.b16 %v656
        %v801 = vunpack.c.h.b16 %v656
        %v802 = vunpack.c.l.b16 %v657
        %v803 = vunpack.c.h.b16 %v657
        %v804 = vunpack.c.l.b16 %v658
        %v805 = vunpack.c.h.b16 %v658
        %v806 = vunpack.c.l.b16 %v659
        %v807 = vunpack.c.h.b16 %v659
        %v808 = vunpack.c.l.b16 %v660
        %v809 = vunpack.c.h.b16 %v660
        %v810 = vunpack.c.l.b16 %v661
        %v811 = vunpack.c.h.b16 %v661
        %v812 = vunpack.c.l.b16 %v662
        %v813 = vunpack.c.h.b16 %v662
        %v814 = vunpack.c.l.b16 %v663
        %v815 = vunpack.c.h.b16 %v663
        %v816 = vunpack.c.l.b16 %v664
        %v817 = vunpack.c.h.b16 %v664
        %v818 = vunpack.c.l.b16 %v665
        %v819 = vunpack.c.h.b16 %v665
        %v820 = vunpack.c.l.b16 %v666
        %v821 = vunpack.c.h.b16 %v666
        %v822 = vunpack.c.l.b16 %v667
        %v823 = vunpack.c.h.b16 %v667
        %v824 = vunpack.c.l.b16 %v668
        %v825 = vunpack.c.h.b16 %v668
        %v826 = vunpack.c.l.b16 %v669
        %v827 = vunpack.c.h.b16 %v669
        %v828 = vunpack.c.l.b16 %v670
        %v829 = vunpack.c.h.b16 %v670
        %v830 = vunpack.c.l.b16 %v671
        %v831 = vunpack.c.h.b16 %v671
        %v832 = vunpack.c.l.b16 %v672
        %v833 = vunpack.c.h.b16 %v672
        %v834 = vunpack.c.l.b16 %v673
        %v835 = vunpack.c.h.b16 %v673
        %v836 = vunpack.c.l.b16 %v674
        %v837 = vunpack.c.h.b16 %v674
        %v838 = vunpack.c.l.b16 %v675
        %v839 = vunpack.c.h.b16 %v675
        %v840 = vunpack.c.l.b16 %v676
        %v841 = vunpack.c.h.b16 %v676
        %v842 = vunpack.c.l.b16 %v677
        %v843 = vunpack.c.h.b16 %v677
        %v844 = vunpack.c.l.b16 %v678
        %v845 = vunpack.c.h.b16 %v678
        %v846 = vunpack.c.l.b16 %v679
        %v847 = vunpack.c.h.b16 %v679
        %v848 = vunpack.c.l.b16 %v680
        %v849 = vunpack.c.h.b16 %v680
        %v850 = vunpack.c.l.b16 %v681
        %v851 = vunpack.c.h.b16 %v681
        %v852 = vunpack.c.l.b16 %v682
        %v853 = vunpack.c.h.b16 %v682
        %v854 = vunpack.c.l.b16 %v683
        %v855 = vunpack.c.h.b16 %v683
        %v856 = vunpack.c.l.b16 %v684
        %v857 = vunpack.c.h.b16 %v684
        %v858 = vunpack.c.l.b16 %v685
        %v859 = vunpack.c.h.b16 %v685
        %v860 = vunpack.c.l.b16 %v686
        %v861 = vunpack.c.h.b16 %v686
        %v862 = vunpack.c.l.b16 %v687
        %v863 = vunpack.c.h.b16 %v687
        %v864 = vunpack.c.l.b16 %v688
        %v865 = vunpack.c.h.b16 %v688
        %v866 = vunpack.c.l.b16 %v689
        %v867 = vunpack.c.h.b16 %v689
        %v868 = vunpack.c.l.b16 %v690
        %v869 = vunpack.c.h.b16 %v690
        %v870 = vunpack.c.l.b16 %v691
        %v871 = vunpack.c.h.b16 %v691
        %v872 = vunpack.c.l.b16 %v692
        %v873 = vunpack.c.h.b16 %v692
        %v874 = vunpack.c.l.b16 %v693
        %v875 = vunpack.c.h.b16 %v693
        %v876 = vunpack.c.l.b16 %v694
        %v877 = vunpack.c.h.b16 %v694
        %v878 = vunpack.c.l.b16 %v695
        %v879 = vunpack.c.h.b16 %v695
        %v880 = vunpack.c.l.b16 %v696
        %v881 = vunpack.c.h.b16 %v696
        %v882 = vunpack.c.l.b16 %v697
        %v883 = vunpack.c.h.b16 %v697
        %v884 = vunpack.c.l.b16 %v698
        %v885 = vunpack.c.h.b16 %v698
        %v886 = vunpack.c.l.b16 %v699
        %v887 = vunpack.c.h.b16 %v699
        %v888 = vunpack.c.l.b16 %v700
        %v889 = vunpack.c.h.b16 %v700
        %v890 = vunpack.c.l.b16 %v701
        %v891 = vunpack.c.h.b16 %v701
        %v892 = vunpack.c.l.b16 %v702
        %v893 = vunpack.c.h.b16 %v702
        %v894 = vunpack.c.l.b16 %v703
        %v895 = vunpack.c.h.b16 %v703
        %v896 = vpack.c.b16 %v776, %v768
        %v897 = vpack.c.b16 %v777, %v769
        %v898 = vpack.c.b16 %v778, %v770
        %v899 = vpack.c.b16 %v779, %v771
        %v900 = vpack.c.b16 %v780, %v772
        %v901 = vpack.c.b16 %v781, %v773
        %v902 = vpack.c.b16 %v782, %v774
        %v903 = vpack.c.b16 %v783, %v775
        %v904 = vpack.c.b16 %v792, %v784
        %v905 = vpack.c.b16 %v793, %v785
        %v906 = vpack.c.b16 %v794, %v786
        %v907 = vpack.c.b16 %v795, %v787
        %v908 = vpack.c.b16 %v796, %v788
        %v909 = vpack.c.b16 %v797, %v789
        %v910 = vpack.c.b16 %v798, %v790
        %v911 = vpack.c.b16 %v799, %v791
        %v912 = vpack.c.b16 %v808, %v800
        %v913 = vpack.c.b16 %v809, %v801
        %v914 = vpack.c.b16 %v810, %v802
        %v915 = vpack.c.b16 %v811, %v803
        %v916 = vpack.c.b16 %v812, %v804
        %v917 = vpack.c.b16 %v813, %v805
        %v918 = vpack.c.b16 %v814, %v806
        %v919 = vpack.c.b16 %v815, %v807
        %v920 = vpack.c.b16 %v824, %v816
        %v921 = vpack.c.b16 %v825, %v817
        %v922 = vpack.c.b16 %v826, %v818
        %v923 = vpack.c.b16 %v827, %v819
        %v924 = vpack.c.b16 %v828, %v820
        %v925 = vpack.c.b16 %v829, %v821
        %v926 = vpack.c.b16 %v830, %v822
        %v927 = vpack.c.b16 %v831, %v823
        %v928 = vpack.c.b16 %v840, %v832
        %v929 = vpack.c.b16 %v841, %v833
        %v930 = vpack.c.b16 %v842, %v834
        %v931 = vpack.c.b16 %v843, %v835
        %v932 = vpack.c.b16 %v844, %v836
        %v933 = vpack.c.b16 %v845, %v837
        %v934 = vpack.c.b16 %v846, %v838
        %v935 = vpack.c.b16 %v847, %v839
        %v936 = vpack.c.b16 %v856, %v848
        %v937 = vpack.c.b16 %v857, %v849
        %v938 = vpack.c.b16 %v858, %v850
        %v939 = vpack.c.b16 %v859, %v851
        %v940 = vpack.c.b16 %v860, %v852
        %v941 = vpack.c.b16 %v861, %v853
        %v942 = vpack.c.b16 %v862, %v854
        %v943 = vpack.c.b16 %v863, %v855
        %v944 = vpack.c.b16 %v872, %v864
        %v945 = vpack.c.b16 %v873, %v865
        %v946 = vpack.c.b16 %v874, %v866
        %v947 = vpack.c.b16 %v875, %v867
        %v948 = vpack.c.b16 %v876, %v868
        %v949 = vpack.c.b16 %v877, %v869
        %v950 = vpack.c.b16 %v878, %v870
        %v951 = vpack.c.b16 %v879, %v871
        %v952 = vpack.c.b16 %v888, %v880
        %v953 = vpack.c.b16 %v889, %v881
        %v954 = vpack.c.b16 %v890, %v882
        %v955 = vpack.c.b16 %v891, %v883
        %v956 = vpack.c.b16 %v892, %v884
        %v957 = vpack.c.b16 %v893, %v885
        %v958 = vpack.c.b16 %v894, %v886
        %v959 = vpack.c.b16 %v895, %v887
        %1024 = vmatprep.subr.bf16.mxu0 %v897
        %1025 = vmatpush1.bf16.msra.mxu0 %v896
        %1026 = vmatprep.subr.bf16.mxu0 %v905
        %1027 = vmatpush1.bf16.msra.mxu0 %v904
        %1028 = vmatprep.subr.bf16.mxu0 %v913
        %1029 = vmatpush1.bf16.msra.mxu0 %v912
        %1030 = vmatprep.subr.bf16.mxu0 %v921
        %1031 = vmatpush1.bf16.msra.mxu0 %v920
        %1032 = vmatprep.subr.bf16.mxu0 %v929
        %1033 = vmatpush1.bf16.msra.mxu0 %v928
        %1034 = vmatprep.subr.bf16.mxu0 %v937
        %1035 = vmatpush1.bf16.msra.mxu0 %v936
        %1036 = vmatprep.subr.bf16.mxu0 %v945
        %1037 = vmatpush1.bf16.msra.mxu0 %v944
        %1038 = vmatprep.subr.bf16.mxu0 %v953
        %1039 = vmatpush1.bf16.msra.mxu0 %v952
        %1040 = vmatprep.subr.bf16.mxu0 0
        %1041 = vmatpush1.bf16.msra.mxu0 0
        %1042 = vmatprep.subr.bf16.mxu0 0
        %1043 = vmatpush1.bf16.msra.mxu0 0
        %1044 = vmatprep.subr.bf16.mxu0 0
        %1045 = vmatpush1.bf16.msra.mxu0 0
        %1046 = vmatprep.subr.bf16.mxu0 0
        %1047 = vmatpush1.bf16.msra.mxu0 0
        %1048 = vmatprep.subr.bf16.mxu0 0
        %1049 = vmatpush1.bf16.msra.mxu0 0
        %1050 = vmatprep.subr.bf16.mxu0 0
        %1051 = vmatpush1.bf16.msra.mxu0 0
        %1052 = vmatprep.subr.bf16.mxu0 0
        %1053 = vmatpush1.bf16.msra.mxu0 0
        %1054 = vmatprep.subr.bf16.mxu0 0
        %1055 = vmatpush1.bf16.msra.mxu0 0
        %1056 = vmatprep.mubr.bf16.mxu0 0
        %1057 = vmatmul.mubr.bf16.gmra.mrb[0].mxu0 %v636
        %v1058 = vpop.f32.mrb[0].mxu0
        %v1059 = vadd.f32 0.0, %v1058
        %v1060 = vpop.f32.mrb[0].mxu0
        %v1061 = vadd.f32 0.0, %v1060
        %v1062 = vpop.f32.mrb[0].mxu0
        %v1063 = vadd.f32 0.0, %v1062
        %v1064 = vpop.f32.mrb[0].mxu0
        %v1065 = vadd.f32 0.0, %v1064
        %1066 = vmatprep.mubr.bf16.mxu0 0
        %1067 = vmatmul.mubr.bf16.gmra.mrb[0].mxu0 %v637
        %v1068 = vpop.f32.mrb[0].mxu0
        %v1069 = vadd.f32 0.0, %v1068
        %v1070 = vpop.f32.mrb[0].mxu0
        %v1071 = vadd.f32 0.0, %v1070
        %v1072 = vpop.f32.mrb[0].mxu0
        %v1073 = vadd.f32 0.0, %v1072
        %v1074 = vpop.f32.mrb[0].mxu0
        %v1075 = vadd.f32 0.0, %v1074
        %1076 = vmatprep.mubr.bf16.mxu0 0
        %1077 = vmatmul.mubr.bf16.gmra.mrb[0].mxu0 %v638
        %v1078 = vpop.f32.mrb[0].mxu0
        %v1079 = vadd.f32 0.0, %v1078
        %v1080 = vpop.f32.mrb[0].mxu0
        %v1081 = vadd.f32 0.0, %v1080
        %v1082 = vpop.f32.mrb[0].mxu0
        %v1083 = vadd.f32 0.0, %v1082
        %v1084 = vpop.f32.mrb[0].mxu0
        %v1085 = vadd.f32 0.0, %v1084
        %1086 = vmatprep.mubr.bf16.mxu0 0
        %1087 = vmatmul.mubr.bf16.gmra.mrb[0].mxu0 %v639
        %v1088 = vpop.f32.mrb[0].mxu0
        %v1089 = vadd.f32 0.0, %v1088
        %v1090 = vpop.f32.mrb[0].mxu0
        %v1091 = vadd.f32 0.0, %v1090
        %v1092 = vpop.f32.mrb[0].mxu0
        %v1093 = vadd.f32 0.0, %v1092
        %v1094 = vpop.f32.mrb[0].mxu0
        %v1095 = vadd.f32 0.0, %v1094
        %1096 = vdwg.mxu0
        %1097 = vmatprep.subr.bf16.mxu0 %v899
        %1098 = vmatpush1.bf16.msra.mxu0 %v898
        %1099 = vmatprep.subr.bf16.mxu0 %v907
        %1100 = vmatpush1.bf16.msra.mxu0 %v906
        %1101 = vmatprep.subr.bf16.mxu0 %v915
        %1102 = vmatpush1.bf16.msra.mxu0 %v914
        %1103 = vmatprep.subr.bf16.mxu0 %v923
        %1104 = vmatpush1.bf16.msra.mxu0 %v922
        %1105 = vmatprep.subr.bf16.mxu0 %v931
        %1106 = vmatpush1.bf16.msra.mxu0 %v930
        %1107 = vmatprep.subr.bf16.mxu0 %v939
        %1108 = vmatpush1.bf16.msra.mxu0 %v938
        %1109 = vmatprep.subr.bf16.mxu0 %v947
        %1110 = vmatpush1.bf16.msra.mxu0 %v946
        %1111 = vmatprep.subr.bf16.mxu0 %v955
        %1112 = vmatpush1.bf16.msra.mxu0 %v954
        %1113 = vmatprep.subr.bf16.mxu0 0
        %1114 = vmatpush1.bf16.msra.mxu0 0
        %1115 = vmatprep.subr.bf16.mxu0 0
        %1116 = vmatpush1.bf16.msra.mxu0 0
        %1117 = vmatprep.subr.bf16.mxu0 0
        %1118 = vmatpush1.bf16.msra.mxu0 0
        %1119 = vmatprep.subr.bf16.mxu0 0
        %1120 = vmatpush1.bf16.msra.mxu0 0
        %1121 = vmatprep.subr.bf16.mxu0 0
        %1122 = vmatpush1.bf16.msra.mxu0 0
        %1123 = vmatprep.subr.bf16.mxu0 0
        %1124 = vmatpush1.bf16.msra.mxu0 0
        %1125 = vmatprep.subr.bf16.mxu0 0
        %1126 = vmatpush1.bf16.msra.mxu0 0
        %1127 = vmatprep.subr.bf16.mxu0 0
        %1128 = vmatpush1.bf16.msra.mxu0 0
        %1129 = vmatprep.mubr.bf16.mxu0 0
        %1130 = vmatmul.mubr.bf16.gmra.mrb[0].mxu0 %v636
        %v1131 = vpop.f32.mrb[0].mxu0
        %v1132 = vadd.f32 0.0, %v1131
        %v1133 = vpop.f32.mrb[0].mxu0
        %v1134 = vadd.f32 0.0, %v1133
        %v1135 = vpop.f32.mrb[0].mxu0
        %v1136 = vadd.f32 0.0, %v1135
        %v1137 = vpop.f32.mrb[0].mxu0
        %v1138 = vadd.f32 0.0, %v1137
        %1139 = vmatprep.mubr.bf16.mxu0 0
        %1140 = vmatmul.mubr.bf16.gmra.mrb[0].mxu0 %v637
        %v1141 = vpop.f32.mrb[0].mxu0
        %v1142 = vadd.f32 0.0, %v1141
        %v1143 = vpop.f32.mrb[0].mxu0
        %v1144 = vadd.f32 0.0, %v1143
        %v1145 = vpop.f32.mrb[0].mxu0
        %v1146 = vadd.f32 0.0, %v1145
        %v1147 = vpop.f32.mrb[0].mxu0
        %v1148 = vadd.f32 0.0, %v1147
        %1149 = vmatprep.mubr.bf16.mxu0 0
        %1150 = vmatmul.mubr.bf16.gmra.mrb[0].mxu0 %v638
        %v1151 = vpop.f32.mrb[0].mxu0
        %v1152 = vadd.f32 0.0, %v1151
        %v1153 = vpop.f32.mrb[0].mxu0
        %v1154 = vadd.f32 0.0, %v1153
        %v1155 = vpop.f32.mrb[0].mxu0
        %v1156 = vadd.f32 0.0, %v1155
        %v1157 = vpop.f32.mrb[0].mxu0
        %v1158 = vadd.f32 0.0, %v1157
        %1159 = vmatprep.mubr.bf16.mxu0 0
        %1160 = vmatmul.mubr.bf16.gmra.mrb[0].mxu0 %v639
        %v1161 = vpop.f32.mrb[0].mxu0
        %v1162 = vadd.f32 0.0, %v1161
        %v1163 = vpop.f32.mrb[0].mxu0
        %v1164 = vadd.f32 0.0, %v1163
        %v1165 = vpop.f32.mrb[0].mxu0
        %v1166 = vadd.f32 0.0, %v1165
        %v1167 = vpop.f32.mrb[0].mxu0
        %v1168 = vadd.f32 0.0, %v1167
        %1169 = vdwg.mxu0
        %1170 = vmatprep.subr.bf16.mxu0 %v901
        %1171 = vmatpush1.bf16.msra.mxu0 %v900
        %1172 = vmatprep.subr.bf16.mxu0 %v909
        %1173 = vmatpush1.bf16.msra.mxu0 %v908
        %1174 = vmatprep.subr.bf16.mxu0 %v917
        %1175 = vmatpush1.bf16.msra.mxu0 %v916
        %1176 = vmatprep.subr.bf16.mxu0 %v925
        %1177 = vmatpush1.bf16.msra.mxu0 %v924
        %1178 = vmatprep.subr.bf16.mxu0 %v933
        %1179 = vmatpush1.bf16.msra.mxu0 %v932
        %1180 = vmatprep.subr.bf16.mxu0 %v941
        %1181 = vmatpush1.bf16.msra.mxu0 %v940
        %1182 = vmatprep.subr.bf16.mxu0 %v949
        %1183 = vmatpush1.bf16.msra.mxu0 %v948
        %1184 = vmatprep.subr.bf16.mxu0 %v957
        %1185 = vmatpush1.bf16.msra.mxu0 %v956
        %1186 = vmatprep.subr.bf16.mxu0 0
        %1187 = vmatpush1.bf16.msra.mxu0 0
        %1188 = vmatprep.subr.bf16.mxu0 0
        %1189 = vmatpush1.bf16.msra.mxu0 0
        %1190 = vmatprep.subr.bf16.mxu0 0
        %1191 = vmatpush1.bf16.msra.mxu0 0
        %1192 = vmatprep.subr.bf16.mxu0 0
        %1193 = vmatpush1.bf16.msra.mxu0 0
        %1194 = vmatprep.subr.bf16.mxu0 0
        %1195 = vmatpush1.bf16.msra.mxu0 0
        %1196 = vmatprep.subr.bf16.mxu0 0
        %1197 = vmatpush1.bf16.msra.mxu0 0
        %1198 = vmatprep.subr.bf16.mxu0 0
        %1199 = vmatpush1.bf16.msra.mxu0 0
        %1200 = vmatprep.subr.bf16.mxu0 0
        %1201 = vmatpush1.bf16.msra.mxu0 0
        %1202 = vmatprep.mubr.bf16.mxu0 0
        %1203 = vmatmul.mubr.bf16.gmra.mrb[0].mxu0 %v636
        %v1204 = vpop.f32.mrb[0].mxu0
        %v1205 = vadd.f32 0.0, %v1204
        %v1206 = vpop.f32.mrb[0].mxu0
        %v1207 = vadd.f32 0.0, %v1206
        %v1208 = vpop.f32.mrb[0].mxu0
        %v1209 = vadd.f32 0.0, %v1208
        %v1210 = vpop.f32.mrb[0].mxu0
        %v1211 = vadd.f32 0.0, %v1210
        %1212 = vmatprep.mubr.bf16.mxu0 0
        %1213 = vmatmul.mubr.bf16.gmra.mrb[0].mxu0 %v637
        %v1214 = vpop.f32.mrb[0].mxu0
        %v1215 = vadd.f32 0.0, %v1214
        %v1216 = vpop.f32.mrb[0].mxu0
        %v1217 = vadd.f32 0.0, %v1216
        %v1218 = vpop.f32.mrb[0].mxu0
        %v1219 = vadd.f32 0.0, %v1218
        %v1220 = vpop.f32.mrb[0].mxu0
        %v1221 = vadd.f32 0.0, %v1220
        %1222 = vmatprep.mubr.bf16.mxu0 0
        %1223 = vmatmul.mubr.bf16.gmra.mrb[0].mxu0 %v638
        %v1224 = vpop.f32.mrb[0].mxu0
        %v1225 = vadd.f32 0.0, %v1224
        %v1226 = vpop.f32.mrb[0].mxu0
        %v1227 = vadd.f32 0.0, %v1226
        %v1228 = vpop.f32.mrb[0].mxu0
        %v1229 = vadd.f32 0.0, %v1228
        %v1230 = vpop.f32.mrb[0].mxu0
        %v1231 = vadd.f32 0.0, %v1230
        %1232 = vmatprep.mubr.bf16.mxu0 0
        %1233 = vmatmul.mubr.bf16.gmra.mrb[0].mxu0 %v639
        %v1234 = vpop.f32.mrb[0].mxu0
        %v1235 = vadd.f32 0.0, %v1234
        %v1236 = vpop.f32.mrb[0].mxu0
        %v1237 = vadd.f32 0.0, %v1236
        %v1238 = vpop.f32.mrb[0].mxu0
        %v1239 = vadd.f32 0.0, %v1238
        %v1240 = vpop.f32.mrb[0].mxu0
        %v1241 = vadd.f32 0.0, %v1240
        %1242 = vdwg.mxu0
        %1243 = vmatprep.subr.bf16.mxu0 %v903
        %1244 = vmatpush1.bf16.msra.mxu0 %v902
        %1245 = vmatprep.subr.bf16.mxu0 %v911
        %1246 = vmatpush1.bf16.msra.mxu0 %v910
        %1247 = vmatprep.subr.bf16.mxu0 %v919
        %1248 = vmatpush1.bf16.msra.mxu0 %v918
        %1249 = vmatprep.subr.bf16.mxu0 %v927
        %1250 = vmatpush1.bf16.msra.mxu0 %v926
        %1251 = vmatprep.subr.bf16.mxu0 %v935
        %1252 = vmatpush1.bf16.msra.mxu0 %v934
        %1253 = vmatprep.subr.bf16.mxu0 %v943
        %1254 = vmatpush1.bf16.msra.mxu0 %v942
        %1255 = vmatprep.subr.bf16.mxu0 %v951
        %1256 = vmatpush1.bf16.msra.mxu0 %v950
        %1257 = vmatprep.subr.bf16.mxu0 %v959
        %1258 = vmatpush1.bf16.msra.mxu0 %v958
        %1259 = vmatprep.subr.bf16.mxu0 0
        %1260 = vmatpush1.bf16.msra.mxu0 0
        %1261 = vmatprep.subr.bf16.mxu0 0
        %1262 = vmatpush1.bf16.msra.mxu0 0
        %1263 = vmatprep.subr.bf16.mxu0 0
        %1264 = vmatpush1.bf16.msra.mxu0 0
        %1265 = vmatprep.subr.bf16.mxu0 0
        %1266 = vmatpush1.bf16.msra.mxu0 0
        %1267 = vmatprep.subr.bf16.mxu0 0
        %1268 = vmatpush1.bf16.msra.mxu0 0
        %1269 = vmatprep.subr.bf16.mxu0 0
        %1270 = vmatpush1.bf16.msra.mxu0 0
        %1271 = vmatprep.subr.bf16.mxu0 0
        %1272 = vmatpush1.bf16.msra.mxu0 0
        %1273 = vmatprep.subr.bf16.mxu0 0
        %1274 = vmatpush1.bf16.msra.mxu0 0
        %1275 = vmatprep.mubr.bf16.mxu0 0
        %1276 = vmatmul.mubr.bf16.gmra.mrb[0].mxu0 %v636
        %v1277 = vpop.f32.mrb[0].mxu0
        %v1278 = vadd.f32 0.0, %v1277
        %v1279 = vpop.f32.mrb[0].mxu0
        %v1280 = vadd.f32 0.0, %v1279
        %v1281 = vpop.f32.mrb[0].mxu0
        %v1282 = vadd.f32 0.0, %v1281
        %v1283 = vpop.f32.mrb[0].mxu0
        %v1284 = vadd.f32 0.0, %v1283
        %1285 = vmatprep.mubr.bf16.mxu0 0
        %1286 = vmatmul.mubr.bf16.gmra.mrb[0].mxu0 %v637
        %v1287 = vpop.f32.mrb[0].mxu0
        %v1288 = vadd.f32 0.0, %v1287
        %v1289 = vpop.f32.mrb[0].mxu0
        %v1290 = vadd.f32 0.0, %v1289
        %v1291 = vpop.f32.mrb[0].mxu0
        %v1292 = vadd.f32 0.0, %v1291
        %v1293 = vpop.f32.mrb[0].mxu0
        %v1294 = vadd.f32 0.0, %v1293
        %1295 = vmatprep.mubr.bf16.mxu0 0
        %1296 = vmatmul.mubr.bf16.gmra.mrb[0].mxu0 %v638
        %v1297 = vpop.f32.mrb[0].mxu0
        %v1298 = vadd.f32 0.0, %v1297
        %v1299 = vpop.f32.mrb[0].mxu0
        %v1300 = vadd.f32 0.0, %v1299
        %v1301 = vpop.f32.mrb[0].mxu0
        %v1302 = vadd.f32 0.0, %v1301
        %v1303 = vpop.f32.mrb[0].mxu0
        %v1304 = vadd.f32 0.0, %v1303
        %1305 = vmatprep.mubr.bf16.mxu0 0
        %1306 = vmatmul.mubr.bf16.gmra.mrb[0].mxu0 %v639
        %v1307 = vpop.f32.mrb[0].mxu0
        %v1308 = vadd.f32 0.0, %v1307
        %v1309 = vpop.f32.mrb[0].mxu0
        %v1310 = vadd.f32 0.0, %v1309
        %v1311 = vpop.f32.mrb[0].mxu0
        %v1312 = vadd.f32 0.0, %v1311
        %v1313 = vpop.f32.mrb[0].mxu0
        %v1314 = vadd.f32 0.0, %v1313
        %1315 = vdwg.mxu0
        %v1316 = vmax.f32 %v1059, %v1063
        %v1317 = vmax.f32 %v1316, %v1069
        %v1318 = vmax.f32 %v1317, %v1073
        %v1319 = vmax.f32 %v1318, %v1079
        %v1320 = vmax.f32 %v1319, %v1083
        %v1321 = vmax.f32 %v1320, %v1089
        %v1322 = vmax.f32 %v1321, %v1093
        %v1323 = vrot.slane %v1322, 4
        %v1324 = vmax.f32 %v1322, %v1323
        %v1325 = vrot.slane %v1324, 2
        %v1326 = vmax.f32 %v1324, %v1325
        %v1327 = vrot.slane %v1326, 1
        %v1328 = vmax.f32 %v1326, %v1327
        %v1329 = vmax.f32 %v1061, %v1065
        %v1330 = vmax.f32 %v1329, %v1071
        %v1331 = vmax.f32 %v1330, %v1075
        %v1332 = vmax.f32 %v1331, %v1081
        %v1333 = vmax.f32 %v1332, %v1085
        %v1334 = vmax.f32 %v1333, %v1091
        %v1335 = vmax.f32 %v1334, %v1095
        %v1336 = vrot.slane %v1335, 4
        %v1337 = vmax.f32 %v1335, %v1336
        %v1338 = vrot.slane %v1337, 2
        %v1339 = vmax.f32 %v1337, %v1338
        %v1340 = vrot.slane %v1339, 1
        %v1341 = vmax.f32 %v1339, %v1340
        %v1342 = vmax.f32 %v1132, %v1136
        %v1343 = vmax.f32 %v1342, %v1142
        %v1344 = vmax.f32 %v1343, %v1146
        %v1345 = vmax.f32 %v1344, %v1152
        %v1346 = vmax.f32 %v1345, %v1156
        %v1347 = vmax.f32 %v1346, %v1162
        %v1348 = vmax.f32 %v1347, %v1166
        %v1349 = vrot.slane %v1348, 4
        %v1350 = vmax.f32 %v1348, %v1349
        %v1351 = vrot.slane %v1350, 2
        %v1352 = vmax.f32 %v1350, %v1351
        %v1353 = vrot.slane %v1352, 1
        %v1354 = vmax.f32 %v1352, %v1353
        %v1355 = vmax.f32 %v1134, %v1138
        %v1356 = vmax.f32 %v1355, %v1144
        %v1357 = vmax.f32 %v1356, %v1148
        %v1358 = vmax.f32 %v1357, %v1154
        %v1359 = vmax.f32 %v1358, %v1158
        %v1360 = vmax.f32 %v1359, %v1164
        %v1361 = vmax.f32 %v1360, %v1168
        %v1362 = vrot.slane %v1361, 4
        %v1363 = vmax.f32 %v1361, %v1362
        %v1364 = vrot.slane %v1363, 2
        %v1365 = vmax.f32 %v1363, %v1364
        %v1366 = vrot.slane %v1365, 1
        %v1367 = vmax.f32 %v1365, %v1366
        %v1368 = vmax.f32 %v1205, %v1209
        %v1369 = vmax.f32 %v1368, %v1215
        %v1370 = vmax.f32 %v1369, %v1219
        %v1371 = vmax.f32 %v1370, %v1225
        %v1372 = vmax.f32 %v1371, %v1229
        %v1373 = vmax.f32 %v1372, %v1235
        %v1374 = vmax.f32 %v1373, %v1239
        %v1375 = vrot.slane %v1374, 4
        %v1376 = vmax.f32 %v1374, %v1375
        %v1377 = vrot.slane %v1376, 2
        %v1378 = vmax.f32 %v1376, %v1377
        %v1379 = vrot.slane %v1378, 1
        %v1380 = vmax.f32 %v1378, %v1379
        %v1381 = vmax.f32 %v1207, %v1211
        %v1382 = vmax.f32 %v1381, %v1217
        %v1383 = vmax.f32 %v1382, %v1221
        %v1384 = vmax.f32 %v1383, %v1227
        %v1385 = vmax.f32 %v1384, %v1231
        %v1386 = vmax.f32 %v1385, %v1237
        %v1387 = vmax.f32 %v1386, %v1241
        %v1388 = vrot.slane %v1387, 4
        %v1389 = vmax.f32 %v1387, %v1388
        %v1390 = vrot.slane %v1389, 2
        %v1391 = vmax.f32 %v1389, %v1390
        %v1392 = vrot.slane %v1391, 1
        %v1393 = vmax.f32 %v1391, %v1392
        %v1394 = vmax.f32 %v1278, %v1282
        %v1395 = vmax.f32 %v1394, %v1288
        %v1396 = vmax.f32 %v1395, %v1292
        %v1397 = vmax.f32 %v1396, %v1298
        %v1398 = vmax.f32 %v1397, %v1302
        %v1399 = vmax.f32 %v1398, %v1308
        %v1400 = vmax.f32 %v1399, %v1312
        %v1401 = vrot.slane %v1400, 4
        %v1402 = vmax.f32 %v1400, %v1401
        %v1403 = vrot.slane %v1402, 2
        %v1404 = vmax.f32 %v1402, %v1403
        %v1405 = vrot.slane %v1404, 1
        %v1406 = vmax.f32 %v1404, %v1405
        %v1407 = vmax.f32 %v1280, %v1284
        %v1408 = vmax.f32 %v1407, %v1290
        %v1409 = vmax.f32 %v1408, %v1294
        %v1410 = vmax.f32 %v1409, %v1300
        %v1411 = vmax.f32 %v1410, %v1304
        %v1412 = vmax.f32 %v1411, %v1310
        %v1413 = vmax.f32 %v1412, %v1314
        %v1414 = vrot.slane %v1413, 4
        %v1415 = vmax.f32 %v1413, %v1414
        %v1416 = vrot.slane %v1415, 2
        %v1417 = vmax.f32 %v1415, %v1416
        %v1418 = vrot.slane %v1417, 1
        %v1419 = vmax.f32 %v1417, %v1418
        %p1420 = scmp.eq.s32.totalorder %s27, 0
        // Predicated region
        $region53: #{tpu_custom_call.1} parent=47 // pred_check
          %p1421 = pneg %p1420
        $region54: #{tpu_custom_call.1} parent=47 // pred_check_branch
          %1423 = sbr.rel (%p1421) target = $region56
        $region55: #{tpu_custom_call.1} parent=47 // pred_region
          %v1432 = vcombine.low %v1328, %v1341
          %v1433 = vcombine.low %v1354, %v1367
          %v1434 = vcombine.low %v1380, %v1393
          %v1435 = vcombine.low %v1406, %v1419
          %v1437 = vunpack.c.l.s4 1966171168
          %v1438 = vunpack.c.0.s8 %v1437
          %v1439 = vlaneseq
          %v1440 = vshrl.u32 %v1439, 7
          %v1441 = vsub.s32 %v1438, %v1440
          %v1442 = vrot.slane %v1432, %v1441
          %v1444 = vunpack.c.l.s4 1966171168
          %v1445 = vunpack.c.0.s8 %v1444
          %v1446 = vlaneseq
          %v1447 = vshrl.u32 %v1446, 7
          %v1448 = vsub.s32 %v1445, %v1447
          %v1449 = vrot.slane %v1433, %v1448
          %v1451 = vunpack.c.l.s4 1966171168
          %v1452 = vunpack.c.0.s8 %v1451
          %v1453 = vlaneseq
          %v1454 = vshrl.u32 %v1453, 7
          %v1455 = vsub.s32 %v1452, %v1454
          %v1456 = vrot.slane %v1434, %v1455
          %v1458 = vunpack.c.l.s4 1966171168
          %v1459 = vunpack.c.0.s8 %v1458
          %v1460 = vlaneseq
          %v1461 = vshrl.u32 %v1460, 7
          %v1462 = vsub.s32 %v1459, %v1461
          %v1463 = vrot.slane %v1435, %v1462
          %v1464 = vcombine.low %v1442, %v1449
          %v1465 = vcombine.low %v1456, %v1463
          %v1467 = vunpack.c.l.s4 1966171168
          %v1468 = vunpack.c.0.s8 %v1467
          %v1469 = vlaneseq
          %v1470 = vshrl.u32 %v1469, 7
          %v1471 = vsub.s32 %v1468, %v1470
          %v1472 = vrot.slane %v1464, %v1471
          %v1474 = vunpack.c.l.s4 1966171168
          %v1475 = vunpack.c.0.s8 %v1474
          %v1476 = vlaneseq
          %v1477 = vshrl.u32 %v1476, 7
          %v1478 = vsub.s32 %v1475, %v1477
          %v1479 = vrot.slane %v1465, %v1478
          %v1480 = vcombine.low %v1472, %v1479
          %1482 = vst [vmem:[#allocation2] sm:$0xff] %v1480
        $region56: #{tpu_custom_call.1} parent=47 // pred_fallthru
          _
        %p1483 = scmp.gt.s32.totalorder %s27, 0
        // Predicated region
        $region57: #{tpu_custom_call.1} parent=47 // pred_check
          %p1484 = pneg %p1483
        $region58: #{tpu_custom_call.1} parent=47 // pred_check_branch
          %1486 = sbr.rel (%p1484) target = $region60
        $region59: #{tpu_custom_call.1} parent=47 // pred_region
          %v1487 = vld [vmem:[#allocation2] sm:$0xff]
          %v1496 = vcombine.low %v1328, %v1341
          %v1497 = vcombine.low %v1354, %v1367
          %v1498 = vcombine.low %v1380, %v1393
          %v1499 = vcombine.low %v1406, %v1419
          %v1501 = vunpack.c.l.s4 1966171168
          %v1502 = vunpack.c.0.s8 %v1501
          %v1503 = vlaneseq
          %v1504 = vshrl.u32 %v1503, 7
          %v1505 = vsub.s32 %v1502, %v1504
          %v1506 = vrot.slane %v1496, %v1505
          %v1508 = vunpack.c.l.s4 1966171168
          %v1509 = vunpack.c.0.s8 %v1508
          %v1510 = vlaneseq
          %v1511 = vshrl.u32 %v1510, 7
          %v1512 = vsub.s32 %v1509, %v1511
          %v1513 = vrot.slane %v1497, %v1512
          %v1515 = vunpack.c.l.s4 1966171168
          %v1516 = vunpack.c.0.s8 %v1515
          %v1517 = vlaneseq
          %v1518 = vshrl.u32 %v1517, 7
          %v1519 = vsub.s32 %v1516, %v1518
          %v1520 = vrot.slane %v1498, %v1519
          %v1522 = vunpack.c.l.s4 1966171168
          %v1523 = vunpack.c.0.s8 %v1522
          %v1524 = vlaneseq
          %v1525 = vshrl.u32 %v1524, 7
          %v1526 = vsub.s32 %v1523, %v1525
          %v1527 = vrot.slane %v1499, %v1526
          %v1528 = vcombine.low %v1506, %v1513
          %v1529 = vcombine.low %v1520, %v1527
          %v1531 = vunpack.c.l.s4 1966171168
          %v1532 = vunpack.c.0.s8 %v1531
          %v1533 = vlaneseq
          %v1534 = vshrl.u32 %v1533, 7
          %v1535 = vsub.s32 %v1532, %v1534
          %v1536 = vrot.slane %v1528, %v1535
          %v1538 = vunpack.c.l.s4 1966171168
          %v1539 = vunpack.c.0.s8 %v1538
          %v1540 = vlaneseq
          %v1541 = vshrl.u32 %v1540, 7
          %v1542 = vsub.s32 %v1539, %v1541
          %v1543 = vrot.slane %v1529, %v1542
          %v1544 = vcombine.low %v1536, %v1543
          %v1546 = vmax.f32 %v1487, %v1544
          %1547 = vst [vmem:[#allocation2] sm:$0xff] %v1546
        $region60: #{tpu_custom_call.1} parent=47 // pred_fallthru
          _
        %p1548 = scmp.eq.s32.totalorder %s27, 3
        // Predicated region
        $region61: #{tpu_custom_call.1} parent=47 // pred_check
          %p1549 = pneg %p1548
        $region62: #{tpu_custom_call.1} parent=47 // pred_check_branch
          %1551 = sbr.rel (%p1549) target = $region64
        $region63: #{tpu_custom_call.1} parent=47 // pred_region
          %v1552 = vld [vmem:[#allocation2] sm:$0xff]
          %v1553 = vld [vmem:[%s6] sm:$0xff]
          %v1554 = vadd.f32 %v1552, %v1553
          %v1555 = vmax.f32 %v1554, 0.0
          %1556 = vst [vmem:[%s307] sm:$0xff] %v1555
        $region64: #{tpu_custom_call.1} parent=47 // pred_fallthru
          _
        %s1557 = sand.u32 %s196, 1
        %s1558 = scalar_lea.sflag [#allocation5], %s1557
        %s1559 = sand.u32 %s196, 1
        %s1560 = smul.addr %s1559, 8
        %s1561 = scalar_lea.vmem [#allocation6], %s1560
        // Predicated region
        $region65: #{tpu_custom_call.1} parent=47 // pred_check
          %p1562 = pneg %p206
        $region66: #{tpu_custom_call.1} parent=47 // pred_check_branch
          %1564 = sbr.rel (%p1562) target = $region68
        $region67: #{tpu_custom_call.1} parent=47 // pred_region
          %s1566 = ssub.s32 128, 128
          %1567 = vsyncadd %s1558, %s1566
          %s1568 = smul.addr %s26, 8
          %s1569 = smul.addr %s1568, 16
          %s1570 = scalar_lea.hbm %s7, %s1569
          %s1572 = sshll.u32 %s1561, 4
          %s1573 = int_to_ptr.vmem [resolvable:$true] %s1572
          %1575 = dma.vmem_to_hbm [thread:$0]  %s1573, 128, %s1570, %s1558
        $region68: #{tpu_custom_call.1} parent=47 // pred_fallthru
          _
      $region48: #{tpu_custom_call.1} parent=5 // pred_fallthru
        _
      %p1576 = scmp.le.s32.totalorder 2, %s17
      // Predicated region
      $region69: #{tpu_custom_call.1} parent=5 // pred_check
        %p1577 = pneg %p1576
      $region70: #{tpu_custom_call.1} parent=5 // pred_check_branch
        %1579 = sbr.rel (%p1577) target = $region72
      $region71: #{tpu_custom_call.1} parent=5 // pred_region
        %s1580 = ssub.s32 %s17, 2
        // Predicated region
        $region73: #{tpu_custom_call.1} parent=71 // pred_check
          %p1581 = pneg %p212
        $region74: #{tpu_custom_call.1} parent=71 // pred_check_branch
          %1583 = sbr.rel (%p1581) target = $region76
        $region75: #{tpu_custom_call.1} parent=71 // pred_region
          %s1584 = sand.u32 %s197, 1
          %s1585 = scalar_lea.sflag [#allocation5], %s1584
          %s1586 = sand.u32 %s197, 1
          %s1587 = smul.addr %s1586, 8
          %s1588 = scalar_lea.vmem [#allocation6], %s1587
          %1589 = dma.done %s1585, 128
        $region76: #{tpu_custom_call.1} parent=71 // pred_fallthru
          _
      $region72: #{tpu_custom_call.1} parent=5 // pred_fallthru
        _
    $region6: #{tpu_custom_call.1} parent=1 // loop_footer
      %s21 = sadd.s32 1, %s17
    $region7: #{tpu_custom_call.1} parent=1 // loop_footer_branch
      %16 = sbr.rel target = $region3
    $region8: #{tpu_custom_call.1} parent=1 // loop_exit
      _
    %1590 = vsyncpa [#allocation4], 1
    %s1591 = scalar_lea.sflag [#allocation4], 1
    %1592 = vsyncpa %s1591, 1
    %1593 = vsyncpa [#allocation5], 1
    %s1594 = scalar_lea.sflag [#allocation5], 1
    %1595 = vsyncpa %s1594, 1

</llo_original>
